<compile_context>
chip_gen: v7x
topology: tpu7x:2x2x1
jax: 0.10.0
libtpu: 0.0.40
codegen_flags: <defaults>
</compile_context>

<pallas_src>
import jax
import jax.numpy as jnp
from jax.experimental import pallas as pl
from jax.experimental.pallas import tpu as pltpu


# ----------------------------- Pallas kernels ------------------------------ #


def _encoder_seq_kernel(x_ref, w_ref, b_ref, h_ref, c_ref):
    """One grid step == one encoder LSTM timestep.

    x_ref : (1, B, E) bf16   embedded source token for step t (time-indexed block)
    w_ref : (E+H, 4H) bf16   fused [W_ih; W_hh]  (constant index_map -> VMEM resident)
    b_ref : (1, 4H)   f32    fused bias (= b_ih + b_hh)
    h_ref, c_ref : (B, H) f32 outputs; constant index_map keeps them resident in
                   VMEM across the time grid, so they double as the recurrent carry.
    """
    t = pl.program_id(0)
    H = h_ref.shape[-1]

    @pl.when(t == 0)
    def _init():
        h_ref[...] = jnp.zeros_like(h_ref)
        c_ref[...] = jnp.zeros_like(c_ref)

    x = x_ref[0]                                                    # (B, E) bf16
    z = jnp.concatenate([x, h_ref[...].astype(jnp.bfloat16)], axis=1)
    gates = (jnp.dot(z, w_ref[...], preferred_element_type=jnp.float32)
             + b_ref[...])                                          # (B, 4H) f32
    i = jax.nn.sigmoid(gates[:, 0:H])
    f = jax.nn.sigmoid(gates[:, H:2 * H])
    g = jnp.tanh(gates[:, 2 * H:3 * H])
    o = jax.nn.sigmoid(gates[:, 3 * H:4 * H])
    c_new = f * c_ref[...] + i * g
    h_new = o * jnp.tanh(c_new)
    c_ref[...] = c_new
    h_ref[...] = h_new


def _decoder_seq_kernel(tf_ref,                                   # scalar prefetch (SMEM)
                        teach_ref, h0_ref, c0_ref, w_ref, b_ref,
                        fcw_ref, fcb_ref, emb_ref,
                        logits_ref,
                        h_sc, c_sc, gx_sc):
    """One grid step s == decoder iteration t = s+1 (produces outputs[s+1]).

    tf_ref    : (T-1,) int32 SMEM   teacher-force mask (tf[0] forced to 1)
    teach_ref : (1, B, E) bf16      embedding of target[s] (time-indexed block)
    h0/c0_ref : (B, H) f32          encoder final state (resident)
    w_ref     : (E+H, 4H) bf16      fused decoder LSTM weights (resident)
    b_ref     : (1, 4H) f32
    fcw_ref   : (H, V) bf16, fcb_ref : (1, V) f32   output projection (resident)
    emb_ref   : (V, E) bf16         decoder embedding table (resident; one-hot gather)
    logits_ref: (1, B, V) f32       output block s of the (T-1, B, V) logits
    h_sc,c_sc : (B, H) f32 scratch  recurrent carry
    gx_sc     : (B, E) bf16 scratch embedded greedy token from previous step
    """
    s = pl.program_id(0)
    H = h_sc.shape[-1]
    B = logits_ref.shape[-2]
    V = logits_ref.shape[-1]

    @pl.when(s == 0)
    def _init():
        h_sc[...] = h0_ref[...]
        c_sc[...] = c0_ref[...]
        gx_sc[...] = jnp.zeros_like(gx_sc)

    # ---- input selection: teacher-forced token vs previous-step greedy token
    use_teacher = tf_ref[s] > 0
    x = jnp.where(use_teacher, teach_ref[0], gx_sc[...])           # (B, E) bf16

    # ---- fused LSTM cell: one MXU push for both gate matmuls
    z = jnp.concatenate([x, h_sc[...].astype(jnp.bfloat16)], axis=1)
    gates = (jnp.dot(z, w_ref[...], preferred_element_type=jnp.float32)
             + b_ref[...])
    i = jax.nn.sigmoid(gates[:, 0:H])
    f = jax.nn.sigmoid(gates[:, H:2 * H])
    g = jnp.tanh(gates[:, 2 * H:3 * H])
    o = jax.nn.sigmoid(gates[:, 3 * H:4 * H])
    c_new = f * c_sc[...] + i * g
    h_new = o * jnp.tanh(c_new)
    c_sc[...] = c_new
    h_sc[...] = h_new

    # ---- FC projection to target vocab (lane-dense V store)
    # TODO(synk): for production vocab sizes, tile fc_w along V (Buffered V-tiles)
    #             so the FC weight fits v7x's 64 MiB VMEM.
    logits = (jnp.dot(h_new.astype(jnp.bfloat16), fcw_ref[...],
                      preferred_element_type=jnp.float32)
              + fcb_ref[...])                                      # (B, V) f32
    logits_ref[0] = logits

    # ---- greedy next-token embedding for the non-teacher-forced branch of step s+1
    # argmax via max + first-index-of-max (avoids arg-reduce lowering concerns)
    lane_iota = jax.lax.broadcasted_iota(jnp.int32, (B, V), 1)
    m = jnp.max(logits, axis=1, keepdims=True)
    cand = jnp.where(logits == m, lane_iota, V)
    best = jnp.min(cand, axis=1, keepdims=True)                    # (B, 1) int32
    onehot = (lane_iota == best).astype(jnp.bfloat16)              # (B, V)
    gx = jnp.dot(onehot, emb_ref[...], preferred_element_type=jnp.float32)
    gx_sc[...] = gx.astype(jnp.bfloat16)


# ------------------------------ thin wrappers ------------------------------ #

_VMEM_LIMIT = 32 * 1024 * 1024  # explicit; safe across v5e / v6e / v7x


def encoder_forward(src_emb, w, b):
    """src_emb: (S, B, E) bf16 -> (h, c) each (B, H) f32."""
    S, B, E = src_emb.shape
    H = w.shape[1] // 4
    return pl.pallas_call(
        _encoder_seq_kernel,
        out_shape=(jax.ShapeDtypeStruct((B, H), jnp.float32),
                   jax.ShapeDtypeStruct((B, H), jnp.float32)),
        grid_spec=pltpu.PrefetchScalarGridSpec(
            num_scalar_prefetch=0,
            grid=(S,),
            in_specs=[
                pl.BlockSpec((1, B, E), lambda t: (t, 0, 0)),
                pl.BlockSpec(w.shape, lambda t: (0, 0)),   # resident weights
                pl.BlockSpec(b.shape, lambda t: (0, 0)),
            ],
            out_specs=(pl.BlockSpec((B, H), lambda t: (0, 0)),   # resident carry
                       pl.BlockSpec((B, H), lambda t: (0, 0))),
        ),
        compiler_params=pltpu.CompilerParams(
            dimension_semantics=("arbitrary",),       # sequential time carry
            vmem_limit_bytes=_VMEM_LIMIT),
    )(src_emb, w, b)


def decoder_forward(tf_mask, teacher_emb, h0, c0, w, b, fc_w, fc_b, dec_emb):
    """teacher_emb: (T-1, B, E) bf16 -> logits (T-1, B, V) f32."""
    Tm1, B, E = teacher_emb.shape
    H = h0.shape[1]
    V = fc_w.shape[1]
    # TODO(synk): on v7x, add a "parallel" batch/vocab grid axis so both
    #             TensorCores are used (time axis must stay "arbitrary").
    return pl.pallas_call(
        _decoder_seq_kernel,
        out_shape=jax.ShapeDtypeStruct((Tm1, B, V), jnp.float32),
        grid_spec=pltpu.PrefetchScalarGridSpec(
            num_scalar_prefetch=1,                     # tf_mask -> SMEM
            grid=(Tm1,),
            in_specs=[
                pl.BlockSpec((1, B, E), lambda s, tf: (s, 0, 0)),
                pl.BlockSpec((B, H), lambda s, tf: (0, 0)),
                pl.BlockSpec((B, H), lambda s, tf: (0, 0)),
                pl.BlockSpec(w.shape, lambda s, tf: (0, 0)),
                pl.BlockSpec(b.shape, lambda s, tf: (0, 0)),
                pl.BlockSpec(fc_w.shape, lambda s, tf: (0, 0)),
                pl.BlockSpec(fc_b.shape, lambda s, tf: (0, 0)),
                pl.BlockSpec(dec_emb.shape, lambda s, tf: (0, 0)),
            ],
            out_specs=pl.BlockSpec((1, B, V), lambda s, tf: (s, 0, 0)),
            scratch_shapes=[
                pltpu.VMEM((B, H), jnp.float32),       # h carry
                pltpu.VMEM((B, H), jnp.float32),       # c carry
                pltpu.VMEM((B, E), jnp.bfloat16),      # greedy-token embedding
            ],
        ),
        compiler_params=pltpu.CompilerParams(
            dimension_semantics=("arbitrary",),
            vmem_limit_bytes=_VMEM_LIMIT),
    )(tf_mask, teacher_emb, h0, c0, w, b, fc_w, fc_b, dec_emb)


# --------------------------- parameters & forward --------------------------- #


def init_params(key, src_vocab, tgt_vocab, emb_dim, hidden):
    ks = jax.random.split(key, 10)
    s = 0.1
    f32, bf16 = jnp.float32, jnp.bfloat16

    def fused_lstm_w(k_ih, k_hh):
        wih = jax.random.normal(k_ih, (emb_dim, 4 * hidden)) * s
        whh = jax.random.normal(k_hh, (hidden, 4 * hidden)) * s
        return jnp.concatenate([wih, whh], axis=0).astype(bf16)   # (E+H, 4H)

    return {
        # Encoder (embedding + single-layer LSTM)
        "enc_emb": (jax.random.normal(ks[0], (src_vocab, emb_dim)) * s).astype(f32),
        "enc_w":   fused_lstm_w(ks[1], ks[2]),
        # fused bias == PyTorch b_ih + b_hh
        "enc_b":   (jax.random.normal(ks[3], (1, 4 * hidden)) * s).astype(f32),
        # Decoder (embedding + single-layer LSTM + FC to target vocab)
        "dec_emb": (jax.random.normal(ks[4], (tgt_vocab, emb_dim)) * s).astype(f32),
        "dec_w":   fused_lstm_w(ks[5], ks[6]),
        "dec_b":   (jax.random.normal(ks[7], (1, 4 * hidden)) * s).astype(f32),
        "fc_w":    (jax.random.normal(ks[8], (hidden, tgt_vocab)) * s).astype(bf16),
        "fc_b":    (jax.random.normal(ks[9], (1, tgt_vocab)) * s).astype(f32),
    }


def seq2seq_forward(params, source, target, tf_key, teacher_force_ratio=0.5):
    """Mirrors Seq2Seq.forward: encode source, then step decoder over target length.

    source: (src_len, batch) int32 token ids
    target: (tgt_len, batch) int32 token ids
    tf_key: jax PRNG key for the (jit-safe) teacher-forcing coin flips
    returns: (tgt_len, batch, tgt_vocab) float32, with outputs[0] == zeros.
    """
    tgt_len, batch = target.shape
    tgt_vocab = params["fc_w"].shape[1]

    # -------- Encoder: one fused kernel over the whole source sequence --------
    src_emb = params["enc_emb"][source].astype(jnp.bfloat16)       # (S, B, E)
    h, c = encoder_forward(src_emb, params["enc_w"], params["enc_b"])

    # -------- Decoder: one fused kernel over the whole target sequence --------
    # Teacher-forcing mask (jit-safe replacement for Python random.random()).
    tf = jax.random.bernoulli(tf_key, teacher_force_ratio, (tgt_len - 1,))
    tf = tf.at[0].set(True).astype(jnp.int32)       # step 0 always uses target[0]

    teacher_emb = params["dec_emb"][target[:tgt_len - 1]].astype(jnp.bfloat16)
    dec_logits = decoder_forward(tf, teacher_emb, h, c,
                                 params["dec_w"], params["dec_b"],
                                 params["fc_w"], params["fc_b"],
                                 params["dec_emb"].astype(jnp.bfloat16))

    # outputs[0] stays zero, as in the reference.
    return jnp.pad(dec_logits, ((1, 0), (0, 0), (0, 0)))           # (T, B, V)


# ----------------------------------- main ----------------------------------- #

if __name__ == "__main__":
    # Small but lane/sublane-aligned config (B multiple of 8; E,H,V multiples of 128).
    SRC_VOCAB = 256
    TGT_VOCAB = 256
    EMB_DIM = 128
    HIDDEN = 128
    SRC_LEN = 8
    TGT_LEN = 8
    BATCH = 8

    key = jax.random.PRNGKey(0)
    k_params, k_src, k_tgt, k_tf = jax.random.split(key, 4)

    params = init_params(k_params, SRC_VOCAB, TGT_VOCAB, EMB_DIM, HIDDEN)

    source = jax.random.randint(k_src, (SRC_LEN, BATCH), 0, SRC_VOCAB, jnp.int32)
    target = jax.random.randint(k_tgt, (TGT_LEN, BATCH), 0, TGT_VOCAB, jnp.int32)

    fwd = jax.jit(seq2seq_forward)
    outputs = fwd(params, source, target, k_tf, 0.5)
    outputs = jax.block_until_ready(outputs)

    assert outputs.shape == (TGT_LEN, BATCH, TGT_VOCAB)
    assert outputs.dtype == jnp.float32
    assert bool(jnp.all(outputs[0] == 0.0))
    assert bool(jnp.all(jnp.isfinite(outputs)))

    print("KERNEL_OK")
</pallas_src>

<mosaic_0001>
module attributes {stable_mosaic.version = 11 : i64} {
  func.func @_encoder_seq_kernel(%arg0: i32, %arg1: memref<1x8x128xbf16, #tpu.memory_space<vmem>>, %arg2: memref<256x512xbf16, #tpu.memory_space<vmem>>, %arg3: memref<1x512xf32, #tpu.memory_space<vmem>>, %arg4: memref<8x128xf32, #tpu.memory_space<vmem>>, %arg5: memref<8x128xf32, #tpu.memory_space<vmem>>) attributes {dimension_semantics = [#tpu.dimension_semantics<arbitrary>], iteration_bounds = array<i64: 8>, scalar_prefetch = 0 : i64, scratch_operands = 0 : i64, tpu.core_type = #tpu.core_type<tc>, window_params = [{transform_indices = @transform_0, window_bounds = array<i64: 1, 8, 128>}, {pipeline_mode = #tpu.pipeline_mode<synchronous>, transform_indices = @transform_1, window_bounds = array<i64: 256, 512>}, {pipeline_mode = #tpu.pipeline_mode<synchronous>, transform_indices = @transform_2, window_bounds = array<i64: 1, 512>}, {pipeline_mode = #tpu.pipeline_mode<synchronous>, transform_indices = @transform_3, window_bounds = array<i64: 8, 128>}, {pipeline_mode = #tpu.pipeline_mode<synchronous>, transform_indices = @transform_4, window_bounds = array<i64: 8, 128>}]} {
    %c0_i32 = arith.constant 0 : i32
    %0 = arith.cmpi eq, %arg0, %c0_i32 : i32
    %1 = arith.extui %0 : i1 to i32
    %c0_i32_0 = arith.constant 0 : i32
    %2 = arith.cmpi ne, %1, %c0_i32_0 : i32
    scf.if %2 {
      %cst_18 = arith.constant 0.000000e+00 : f32
      %41 = vector.broadcast %cst_18 : f32 to vector<8x128xf32>
      %c0_19 = arith.constant 0 : index
      %c0_20 = arith.constant 0 : index
      %42 = vector.load %arg4[%c0_19, %c0_20] : memref<8x128xf32, #tpu.memory_space<vmem>>, vector<8x128xf32>
      tpu.vector_store %arg4[%c0_19, %c0_20], %41 {strides = array<i32>} : memref<8x128xf32, #tpu.memory_space<vmem>>, vector<8x128xf32>,
      %cst_21 = arith.constant 0.000000e+00 : f32
      %43 = vector.broadcast %cst_21 : f32 to vector<8x128xf32>
      %c0_22 = arith.constant 0 : index
      %c0_23 = arith.constant 0 : index
      %44 = vector.load %arg5[%c0_22, %c0_23] : memref<8x128xf32, #tpu.memory_space<vmem>>, vector<8x128xf32>
      tpu.vector_store %arg5[%c0_22, %c0_23], %43 {strides = array<i32>} : memref<8x128xf32, #tpu.memory_space<vmem>>, vector<8x128xf32>,
    } else {
    }
    %c0 = arith.constant 0 : index
    %c0_1 = arith.constant 0 : index
    %c0_2 = arith.constant 0 : index
    %3 = vector.load %arg1[%c0, %c0_1, %c0_2] : memref<1x8x128xbf16, #tpu.memory_space<vmem>>, vector<1x8x128xbf16>
    %4 = vector.shape_cast %3 : vector<1x8x128xbf16> to vector<8x128xbf16>
    %c0_3 = arith.constant 0 : index
    %c0_4 = arith.constant 0 : index
    %5 = vector.load %arg4[%c0_3, %c0_4] : memref<8x128xf32, #tpu.memory_space<vmem>>, vector<8x128xf32>
    %6 = arith.truncf %5 : vector<8x128xf32> to vector<8x128xbf16>
    %7 = tpu.concatenate %4, %6 in 1 : vector<8x128xbf16>, vector<8x128xbf16> -> vector<8x256xbf16>
    %c0_5 = arith.constant 0 : index
    %c0_6 = arith.constant 0 : index
    %8 = vector.load %arg2[%c0_5, %c0_6] : memref<256x512xbf16, #tpu.memory_space<vmem>>, vector<256x512xbf16>
    %cst = arith.constant dense<0.000000e+00> : vector<8x512xf32>
    %9 = tpu.matmul %7, %8, %cst {dimension_numbers = #tpu.dot_dimension_numbers<[1], [0], [0], [1], [0, 0, 1, 1], [], []>} : vector<8x256xbf16>, vector<256x512xbf16>, vector<8x512xf32> -> vector<8x512xf32>
    %c0_7 = arith.constant 0 : index
    %c0_8 = arith.constant 0 : index
    %10 = vector.load %arg3[%c0_7, %c0_8] : memref<1x512xf32, #tpu.memory_space<vmem>>, vector<1x512xf32>
    %11 = vector.broadcast %10 : vector<1x512xf32> to vector<8x512xf32>
    %12 = arith.addf %9, %11 : vector<8x512xf32>
    %13 = vector.extract_strided_slice %12 {offsets = [0, 0], sizes = [8, 128], strides = [1, 1]} : vector<8x512xf32> to vector<8x128xf32>
    %14 = arith.negf %13 : vector<8x128xf32>
    %15 = math.exp %14 : vector<8x128xf32>
    %cst_9 = arith.constant 1.000000e+00 : f32
    %16 = vector.broadcast %cst_9 : f32 to vector<8x128xf32>
    %17 = arith.addf %16, %15 : vector<8x128xf32>
    %18 = arith.divf %16, %17 : vector<8x128xf32>
    %19 = vector.extract_strided_slice %12 {offsets = [0, 128], sizes = [8, 128], strides = [1, 1]} : vector<8x512xf32> to vector<8x128xf32>
    %20 = arith.negf %19 : vector<8x128xf32>
    %21 = math.exp %20 : vector<8x128xf32>
    %cst_10 = arith.constant 1.000000e+00 : f32
    %22 = vector.broadcast %cst_10 : f32 to vector<8x128xf32>
    %23 = arith.addf %22, %21 : vector<8x128xf32>
    %24 = arith.divf %22, %23 : vector<8x128xf32>
    %25 = vector.extract_strided_slice %12 {offsets = [0, 256], sizes = [8, 128], strides = [1, 1]} : vector<8x512xf32> to vector<8x128xf32>
    %26 = math.tanh %25 : vector<8x128xf32>
    %27 = vector.extract_strided_slice %12 {offsets = [0, 384], sizes = [8, 128], strides = [1, 1]} : vector<8x512xf32> to vector<8x128xf32>
    %28 = arith.negf %27 : vector<8x128xf32>
    %29 = math.exp %28 : vector<8x128xf32>
    %cst_11 = arith.constant 1.000000e+00 : f32
    %30 = vector.broadcast %cst_11 : f32 to vector<8x128xf32>
    %31 = arith.addf %30, %29 : vector<8x128xf32>
    %32 = arith.divf %30, %31 : vector<8x128xf32>
    %c0_12 = arith.constant 0 : index
    %c0_13 = arith.constant 0 : index
    %33 = vector.load %arg5[%c0_12, %c0_13] : memref<8x128xf32, #tpu.memory_space<vmem>>, vector<8x128xf32>
    %34 = arith.mulf %24, %33 : vector<8x128xf32>
    %35 = arith.mulf %18, %26 : vector<8x128xf32>
    %36 = arith.addf %34, %35 : vector<8x128xf32>
    %37 = math.tanh %36 : vector<8x128xf32>
    %38 = arith.mulf %32, %37 : vector<8x128xf32>
    %c0_14 = arith.constant 0 : index
    %c0_15 = arith.constant 0 : index
    %39 = vector.load %arg5[%c0_14, %c0_15] : memref<8x128xf32, #tpu.memory_space<vmem>>, vector<8x128xf32>
    tpu.vector_store %arg5[%c0_14, %c0_15], %36 {strides = array<i32>} : memref<8x128xf32, #tpu.memory_space<vmem>>, vector<8x128xf32>,
    %c0_16 = arith.constant 0 : index
    %c0_17 = arith.constant 0 : index
    %40 = vector.load %arg4[%c0_16, %c0_17] : memref<8x128xf32, #tpu.memory_space<vmem>>, vector<8x128xf32>
    tpu.vector_store %arg4[%c0_16, %c0_17], %38 {strides = array<i32>} : memref<8x128xf32, #tpu.memory_space<vmem>>, vector<8x128xf32>,
    return
  }
  func.func @transform_0(%arg0: i32) -> (i32, i32, i32) {
    %c0_i32 = arith.constant 0 : i32
    %c0_i32_0 = arith.constant 0 : i32
    %c0_i32_1 = arith.constant 0 : i32
    return %arg0, %c0_i32, %c0_i32_0 : i32, i32, i32
  }
  func.func @transform_1(%arg0: i32) -> (i32, i32) {
    %c0_i32 = arith.constant 0 : i32
    %c0_i32_0 = arith.constant 0 : i32
    %c0_i32_1 = arith.constant 0 : i32
    return %c0_i32, %c0_i32_0 : i32, i32
  }
  func.func @transform_2(%arg0: i32) -> (i32, i32) {
    %c0_i32 = arith.constant 0 : i32
    %c0_i32_0 = arith.constant 0 : i32
    %c0_i32_1 = arith.constant 0 : i32
    return %c0_i32, %c0_i32_0 : i32, i32
  }
  func.func @transform_3(%arg0: i32) -> (i32, i32) {
    %c0_i32 = arith.constant 0 : i32
    %c0_i32_0 = arith.constant 0 : i32
    %c0_i32_1 = arith.constant 0 : i32
    return %c0_i32, %c0_i32_0 : i32, i32
  }
  func.func @transform_4(%arg0: i32) -> (i32, i32) {
    %c0_i32 = arith.constant 0 : i32
    %c0_i32_0 = arith.constant 0 : i32
    %c0_i32_1 = arith.constant 0 : i32
    return %c0_i32, %c0_i32_0 : i32, i32
  }
}

module attributes {stable_mosaic.version = 11 : i64} {
  func.func @_decoder_seq_kernel(%arg0: i32, %arg1: memref<7xi32, #tpu.memory_space<smem>>, %arg2: memref<1x8x128xbf16, #tpu.memory_space<vmem>>, %arg3: memref<8x128xf32, #tpu.memory_space<vmem>>, %arg4: memref<8x128xf32, #tpu.memory_space<vmem>>, %arg5: memref<256x512xbf16, #tpu.memory_space<vmem>>, %arg6: memref<1x512xf32, #tpu.memory_space<vmem>>, %arg7: memref<128x256xbf16, #tpu.memory_space<vmem>>, %arg8: memref<1x256xf32, #tpu.memory_space<vmem>>, %arg9: memref<256x128xbf16, #tpu.memory_space<vmem>>, %arg10: memref<1x8x256xf32, #tpu.memory_space<vmem>>, %arg11: memref<8x128xf32, #tpu.memory_space<vmem>>, %arg12: memref<8x128xf32, #tpu.memory_space<vmem>>, %arg13: memref<8x128xbf16, #tpu.memory_space<vmem>>) attributes {dimension_semantics = [#tpu.dimension_semantics<arbitrary>], iteration_bounds = array<i64: 7>, scalar_prefetch = 1 : i64, scratch_operands = 3 : i64, tpu.core_type = #tpu.core_type<tc>, window_params = [{transform_indices = @transform_0, window_bounds = array<i64: 1, 8, 128>}, {pipeline_mode = #tpu.pipeline_mode<synchronous>, transform_indices = @transform_1, window_bounds = array<i64: 8, 128>}, {pipeline_mode = #tpu.pipeline_mode<synchronous>, transform_indices = @transform_2, window_bounds = array<i64: 8, 128>}, {pipeline_mode = #tpu.pipeline_mode<synchronous>, transform_indices = @transform_3, window_bounds = array<i64: 256, 512>}, {pipeline_mode = #tpu.pipeline_mode<synchronous>, transform_indices = @transform_4, window_bounds = array<i64: 1, 512>}, {pipeline_mode = #tpu.pipeline_mode<synchronous>, transform_indices = @transform_5, window_bounds = array<i64: 128, 256>}, {pipeline_mode = #tpu.pipeline_mode<synchronous>, transform_indices = @transform_6, window_bounds = array<i64: 1, 256>}, {pipeline_mode = #tpu.pipeline_mode<synchronous>, transform_indices = @transform_7, window_bounds = array<i64: 256, 128>}, {transform_indices = @transform_8, window_bounds = array<i64: 1, 8, 256>}]} {
    %c0_i32 = arith.constant 0 : i32
    %0 = arith.cmpi eq, %arg0, %c0_i32 : i32
    %1 = arith.extui %0 : i1 to i32
    %c0_i32_0 = arith.constant 0 : i32
    %2 = arith.cmpi ne, %1, %c0_i32_0 : i32
    scf.if %2 {
      %c0_36 = arith.constant 0 : index
      %c0_37 = arith.constant 0 : index
      %73 = vector.load %arg3[%c0_36, %c0_37] : memref<8x128xf32, #tpu.memory_space<vmem>>, vector<8x128xf32>
      %c0_38 = arith.constant 0 : index
      %c0_39 = arith.constant 0 : index
      %74 = vector.load %arg11[%c0_38, %c0_39] : memref<8x128xf32, #tpu.memory_space<vmem>>, vector<8x128xf32>
      tpu.vector_store %arg11[%c0_38, %c0_39], %73 {strides = array<i32>} : memref<8x128xf32, #tpu.memory_space<vmem>>, vector<8x128xf32>,
      %c0_40 = arith.constant 0 : index
      %c0_41 = arith.constant 0 : index
      %75 = vector.load %arg4[%c0_40, %c0_41] : memref<8x128xf32, #tpu.memory_space<vmem>>, vector<8x128xf32>
      %c0_42 = arith.constant 0 : index
      %c0_43 = arith.constant 0 : index
      %76 = vector.load %arg12[%c0_42, %c0_43] : memref<8x128xf32, #tpu.memory_space<vmem>>, vector<8x128xf32>
      tpu.vector_store %arg12[%c0_42, %c0_43], %75 {strides = array<i32>} : memref<8x128xf32, #tpu.memory_space<vmem>>, vector<8x128xf32>,
      %cst_44 = arith.constant 0.000000e+00 : bf16
      %77 = vector.broadcast %cst_44 : bf16 to vector<8x128xbf16>
      %c0_45 = arith.constant 0 : index
      %c0_46 = arith.constant 0 : index
      %78 = vector.load %arg13[%c0_45, %c0_46] : memref<8x128xbf16, #tpu.memory_space<vmem>>, vector<8x128xbf16>
      tpu.vector_store %arg13[%c0_45, %c0_46], %77 {strides = array<i32>} : memref<8x128xbf16, #tpu.memory_space<vmem>>, vector<8x128xbf16>,
    } else {
    }
    %3 = arith.index_cast %arg0 : i32 to index
    %4 = memref.load %arg1[%3] : memref<7xi32, #tpu.memory_space<smem>>
    %c0_i32_1 = arith.constant 0 : i32
    %5 = arith.cmpi sgt, %4, %c0_i32_1 : i32
    %c0 = arith.constant 0 : index
    %c0_2 = arith.constant 0 : index
    %c0_3 = arith.constant 0 : index
    %6 = vector.load %arg2[%c0, %c0_2, %c0_3] : memref<1x8x128xbf16, #tpu.memory_space<vmem>>, vector<1x8x128xbf16>
    %7 = vector.shape_cast %6 : vector<1x8x128xbf16> to vector<8x128xbf16>
    %c0_4 = arith.constant 0 : index
    %c0_5 = arith.constant 0 : index
    %8 = vector.load %arg13[%c0_4, %c0_5] : memref<8x128xbf16, #tpu.memory_space<vmem>>, vector<8x128xbf16>
    %9 = arith.select %5, %7, %8 : vector<8x128xbf16>
    %c0_6 = arith.constant 0 : index
    %c0_7 = arith.constant 0 : index
    %10 = vector.load %arg11[%c0_6, %c0_7] : memref<8x128xf32, #tpu.memory_space<vmem>>, vector<8x128xf32>
    %11 = arith.truncf %10 : vector<8x128xf32> to vector<8x128xbf16>
    %12 = tpu.concatenate %9, %11 in 1 : vector<8x128xbf16>, vector<8x128xbf16> -> vector<8x256xbf16>
    %c0_8 = arith.constant 0 : index
    %c0_9 = arith.constant 0 : index
    %13 = vector.load %arg5[%c0_8, %c0_9] : memref<256x512xbf16, #tpu.memory_space<vmem>>, vector<256x512xbf16>
    %cst = arith.constant dense<0.000000e+00> : vector<8x512xf32>
    %14 = tpu.matmul %12, %13, %cst {dimension_numbers = #tpu.dot_dimension_numbers<[1], [0], [0], [1], [0, 0, 1, 1], [], []>} : vector<8x256xbf16>, vector<256x512xbf16>, vector<8x512xf32> -> vector<8x512xf32>
    %c0_10 = arith.constant 0 : index
    %c0_11 = arith.constant 0 : index
    %15 = vector.load %arg6[%c0_10, %c0_11] : memref<1x512xf32, #tpu.memory_space<vmem>>, vector<1x512xf32>
    %16 = vector.broadcast %15 : vector<1x512xf32> to vector<8x512xf32>
    %17 = arith.addf %14, %16 : vector<8x512xf32>
    %18 = vector.extract_strided_slice %17 {offsets = [0, 0], sizes = [8, 128], strides = [1, 1]} : vector<8x512xf32> to vector<8x128xf32>
    %19 = arith.negf %18 : vector<8x128xf32>
    %20 = math.exp %19 : vector<8x128xf32>
    %cst_12 = arith.constant 1.000000e+00 : f32
    %21 = vector.broadcast %cst_12 : f32 to vector<8x128xf32>
    %22 = arith.addf %21, %20 : vector<8x128xf32>
    %23 = arith.divf %21, %22 : vector<8x128xf32>
    %24 = vector.extract_strided_slice %17 {offsets = [0, 128], sizes = [8, 128], strides = [1, 1]} : vector<8x512xf32> to vector<8x128xf32>
    %25 = arith.negf %24 : vector<8x128xf32>
    %26 = math.exp %25 : vector<8x128xf32>
    %cst_13 = arith.constant 1.000000e+00 : f32
    %27 = vector.broadcast %cst_13 : f32 to vector<8x128xf32>
    %28 = arith.addf %27, %26 : vector<8x128xf32>
    %29 = arith.divf %27, %28 : vector<8x128xf32>
    %30 = vector.extract_strided_slice %17 {offsets = [0, 256], sizes = [8, 128], strides = [1, 1]} : vector<8x512xf32> to vector<8x128xf32>
    %31 = math.tanh %30 : vector<8x128xf32>
    %32 = vector.extract_strided_slice %17 {offsets = [0, 384], sizes = [8, 128], strides = [1, 1]} : vector<8x512xf32> to vector<8x128xf32>
    %33 = arith.negf %32 : vector<8x128xf32>
    %34 = math.exp %33 : vector<8x128xf32>
    %cst_14 = arith.constant 1.000000e+00 : f32
    %35 = vector.broadcast %cst_14 : f32 to vector<8x128xf32>
    %36 = arith.addf %35, %34 : vector<8x128xf32>
    %37 = arith.divf %35, %36 : vector<8x128xf32>
    %c0_15 = arith.constant 0 : index
    %c0_16 = arith.constant 0 : index
    %38 = vector.load %arg12[%c0_15, %c0_16] : memref<8x128xf32, #tpu.memory_space<vmem>>, vector<8x128xf32>
    %39 = arith.mulf %29, %38 : vector<8x128xf32>
    %40 = arith.mulf %23, %31 : vector<8x128xf32>
    %41 = arith.addf %39, %40 : vector<8x128xf32>
    %42 = math.tanh %41 : vector<8x128xf32>
    %43 = arith.mulf %37, %42 : vector<8x128xf32>
    %c0_17 = arith.constant 0 : index
    %c0_18 = arith.constant 0 : index
    %44 = vector.load %arg12[%c0_17, %c0_18] : memref<8x128xf32, #tpu.memory_space<vmem>>, vector<8x128xf32>
    tpu.vector_store %arg12[%c0_17, %c0_18], %41 {strides = array<i32>} : memref<8x128xf32, #tpu.memory_space<vmem>>, vector<8x128xf32>,
    %c0_19 = arith.constant 0 : index
    %c0_20 = arith.constant 0 : index
    %45 = vector.load %arg11[%c0_19, %c0_20] : memref<8x128xf32, #tpu.memory_space<vmem>>, vector<8x128xf32>
    tpu.vector_store %arg11[%c0_19, %c0_20], %43 {strides = array<i32>} : memref<8x128xf32, #tpu.memory_space<vmem>>, vector<8x128xf32>,
    %46 = arith.truncf %43 : vector<8x128xf32> to vector<8x128xbf16>
    %c0_21 = arith.constant 0 : index
    %c0_22 = arith.constant 0 : index
    %47 = vector.load %arg7[%c0_21, %c0_22] : memref<128x256xbf16, #tpu.memory_space<vmem>>, vector<128x256xbf16>
    %cst_23 = arith.constant dense<0.000000e+00> : vector<8x256xf32>
    %48 = tpu.matmul %46, %47, %cst_23 {dimension_numbers = #tpu.dot_dimension_numbers<[1], [0], [0], [1], [0, 0, 1, 1], [], []>} : vector<8x128xbf16>, vector<128x256xbf16>, vector<8x256xf32> -> vector<8x256xf32>
    %c0_24 = arith.constant 0 : index
    %c0_25 = arith.constant 0 : index
    %49 = vector.load %arg8[%c0_24, %c0_25] : memref<1x256xf32, #tpu.memory_space<vmem>>, vector<1x256xf32>
    %50 = vector.broadcast %49 : vector<1x256xf32> to vector<8x256xf32>
    %51 = arith.addf %48, %50 : vector<8x256xf32>
    %c0_26 = arith.constant 0 : index
    %c0_27 = arith.constant 0 : index
    %c0_28 = arith.constant 0 : index
    %52 = vector.load %arg10[%c0_26, %c0_27, %c0_28] : memref<1x8x256xf32, #tpu.memory_space<vmem>>, vector<1x8x256xf32>
    %53 = vector.shape_cast %52 : vector<1x8x256xf32> to vector<8x256xf32>
    %54 = vector.shape_cast %51 : vector<8x256xf32> to vector<1x8x256xf32>
    tpu.vector_store %arg10[%c0_26, %c0_27, %c0_28], %54 {strides = array<i32>} : memref<1x8x256xf32, #tpu.memory_space<vmem>>, vector<1x8x256xf32>,
    %55 = tpu.iota {dimensions = array<i32: 1>} : vector<8x256xi32>
    %cst_29 = arith.constant dense<0xFF800000> : vector<8xf32>
    %56 = vector.multi_reduction <maximumf>, %51, %cst_29 [1] : vector<8x256xf32> to vector<8xf32>
    %57 = vector.shape_cast %56 : vector<8xf32> to vector<8x1xf32>
    %58 = vector.broadcast %57 : vector<8x1xf32> to vector<8x256xf32>
    %59 = arith.cmpf oeq, %51, %58 : vector<8x256xf32>
    %c256_i32 = arith.constant 256 : i32
    %60 = vector.broadcast %c256_i32 : i32 to vector<8x256xi32>
    %61 = arith.select %59, %55, %60 : vector<8x256xi1>, vector<8x256xi32>
    %cst_30 = arith.constant dense<2147483647> : vector<8xi32>
    %62 = vector.multi_reduction <minsi>, %61, %cst_30 [1] : vector<8x256xi32> to vector<8xi32>
    %63 = vector.shape_cast %62 : vector<8xi32> to vector<8x1xi32>
    %64 = vector.broadcast %63 : vector<8x1xi32> to vector<8x256xi32>
    %65 = arith.cmpi eq, %55, %64 : vector<8x256xi32>
    %66 = arith.extui %65 : vector<8x256xi1> to vector<8x256xi32>
    %67 = arith.sitofp %66 : vector<8x256xi32> to vector<8x256xf32>
    %68 = arith.truncf %67 : vector<8x256xf32> to vector<8x256xbf16>
    %c0_31 = arith.constant 0 : index
    %c0_32 = arith.constant 0 : index
    %69 = vector.load %arg9[%c0_31, %c0_32] : memref<256x128xbf16, #tpu.memory_space<vmem>>, vector<256x128xbf16>
    %cst_33 = arith.constant dense<0.000000e+00> : vector<8x128xf32>
    %70 = tpu.matmul %68, %69, %cst_33 {dimension_numbers = #tpu.dot_dimension_numbers<[1], [0], [0], [1], [0, 0, 1, 1], [], []>} : vector<8x256xbf16>, vector<256x128xbf16>, vector<8x128xf32> -> vector<8x128xf32>
    %71 = arith.truncf %70 : vector<8x128xf32> to vector<8x128xbf16>
    %c0_34 = arith.constant 0 : index
    %c0_35 = arith.constant 0 : index
    %72 = vector.load %arg13[%c0_34, %c0_35] : memref<8x128xbf16, #tpu.memory_space<vmem>>, vector<8x128xbf16>
    tpu.vector_store %arg13[%c0_34, %c0_35], %71 {strides = array<i32>} : memref<8x128xbf16, #tpu.memory_space<vmem>>, vector<8x128xbf16>,
    return
  }
  func.func @transform_0(%arg0: i32, %arg1: memref<7xi32, #tpu.memory_space<smem>>) -> (i32, i32, i32) {
    %c0_i32 = arith.constant 0 : i32
    %c0_i32_0 = arith.constant 0 : i32
    %c0_i32_1 = arith.constant 0 : i32
    return %arg0, %c0_i32, %c0_i32_0 : i32, i32, i32
  }
  func.func @transform_1(%arg0: i32, %arg1: memref<7xi32, #tpu.memory_space<smem>>) -> (i32, i32) {
    %c0_i32 = arith.constant 0 : i32
    %c0_i32_0 = arith.constant 0 : i32
    %c0_i32_1 = arith.constant 0 : i32
    return %c0_i32, %c0_i32_0 : i32, i32
  }
  func.func @transform_2(%arg0: i32, %arg1: memref<7xi32, #tpu.memory_space<smem>>) -> (i32, i32) {
    %c0_i32 = arith.constant 0 : i32
    %c0_i32_0 = arith.constant 0 : i32
    %c0_i32_1 = arith.constant 0 : i32
    return %c0_i32, %c0_i32_0 : i32, i32
  }
  func.func @transform_3(%arg0: i32, %arg1: memref<7xi32, #tpu.memory_space<smem>>) -> (i32, i32) {
    %c0_i32 = arith.constant 0 : i32
    %c0_i32_0 = arith.constant 0 : i32
    %c0_i32_1 = arith.constant 0 : i32
    return %c0_i32, %c0_i32_0 : i32, i32
  }
  func.func @transform_4(%arg0: i32, %arg1: memref<7xi32, #tpu.memory_space<smem>>) -> (i32, i32) {
    %c0_i32 = arith.constant 0 : i32
    %c0_i32_0 = arith.constant 0 : i32
    %c0_i32_1 = arith.constant 0 : i32
    return %c0_i32, %c0_i32_0 : i32, i32
  }
  func.func @transform_5(%arg0: i32, %arg1: memref<7xi32, #tpu.memory_space<smem>>) -> (i32, i32) {
    %c0_i32 = arith.constant 0 : i32
    %c0_i32_0 = arith.constant 0 : i32
    %c0_i32_1 = arith.constant 0 : i32
    return %c0_i32, %c0_i32_0 : i32, i32
  }
  func.func @transform_6(%arg0: i32, %arg1: memref<7xi32, #tpu.memory_space<smem>>) -> (i32, i32) {
    %c0_i32 = arith.constant 0 : i32
    %c0_i32_0 = arith.constant 0 : i32
    %c0_i32_1 = arith.constant 0 : i32
    return %c0_i32, %c0_i32_0 : i32, i32
  }
  func.func @transform_7(%arg0: i32, %arg1: memref<7xi32, #tpu.memory_space<smem>>) -> (i32, i32) {
    %c0_i32 = arith.constant 0 : i32
    %c0_i32_0 = arith.constant 0 : i32
    %c0_i32_1 = arith.constant 0 : i32
    return %c0_i32, %c0_i32_0 : i32, i32
  }
  func.func @transform_8(%arg0: i32, %arg1: memref<7xi32, #tpu.memory_space<smem>>) -> (i32, i32, i32) {
    %c0_i32 = arith.constant 0 : i32
    %c0_i32_0 = arith.constant 0 : i32
    %c0_i32_1 = arith.constant 0 : i32
    return %arg0, %c0_i32, %c0_i32_0 : i32, i32, i32
  }
}

</mosaic_0001>

<llo_original>
// kernel: seq2seq_forward.2
$region0: #{seq2seq_forward.2}
  #allocation0 [shape = 'u32[]', space=smem, size = 0x4, offset = 0x4, fixed_abs, tag = 'smem constant byte address 0x4 - core index']
  #allocation1 [shape = 'u32[144,128]{1,0:T(1,128)}', space=vmem, size = 0x12000, scoped, tag = 'internal scratch']
  %s0 = inlined_call_operand.vmem [shape: bf16[8,8,128], index: 0, kind: input, shape index: {}]
  %s1 = inlined_call_operand.vmem [shape: bf16[256,512], index: 1, kind: input, shape index: {}]
  %s2 = inlined_call_operand.vmem [shape: f32[1,512], index: 2, kind: input, shape index: {}]
  %s3 = inlined_call_operand.vmem [shape: f32[8,128], index: 3, kind: output, shape index: {0}]
  %s4 = inlined_call_operand.vmem [shape: f32[8,128], index: 4, kind: output, shape index: {1}]
  %5 = xla_tuple %s3, %s4
  %s6 = sld [smem:[#allocation0]]
  $region57: #{seq2seq_forward.2} parent=0
    _
  %s8 = ssub.s32 1, %s6
  %s9 = scalar_select 0, %s8, %s6
  loop: start=0, step=1, limit=10
  $region2: #{seq2seq_forward.2} parent=0 // loop_pre_header
    _
  $region3: #{seq2seq_forward.2} parent=0 // loop_header
    %s11 = sphi 0, %s15
    %p12 = scmp.ge.s32.totalorder %s11, 10
    %s21 = sphi 0, %s23
    %s24 = sphi 0, %s21
    %s25 = sphi 0, %s24
    %s41 = sphi 0, %s25
    %s45 = sphi 0, %s45
    %s47 = sphi 0, %s45
    %s48 = sphi 0, %s47
    %s62 = sphi 0, %s48
    %s66 = sphi 0, %s66
    %s68 = sphi 0, %s66
    %s69 = sphi 0, %s68
    %s83 = sphi 0, %s69
    %s87 = sphi 0, %s87
    %s89 = sphi 0, %s87
    %s90 = sphi 0, %s89
    %s104 = sphi 0, %s90
    %s108 = sphi 0, %s108
    %s110 = sphi 0, %s108
    %s111 = sphi 0, %s110
    %s125 = sphi 0, %s111
  $region4: #{seq2seq_forward.2} parent=0 // loop_header_branch
    %14 = sbr.rel (%p12) target = $region8
  $region5: #{seq2seq_forward.2} parent=0 // loop_body
    %s16 = ssub.s32 %s11, 1
    %s17 = ssub.s32 %s11, 2
    %s18 = sadd.s32 %s11, 1
    %s19 = ssub.s32 %s11, %s18
    %p20 = scmp.eq.s32.totalorder %s19, 0
    %s22 = sadd.s32 %s21, 1
    %s23 = scalar_select %p20, %s21, %s22
    %p26 = pneg %p20
    %p27 = scmp.eq.s32.totalorder %s11, 7
    %p28 = por %p26, %p27
    %p29 = scmp.ne.s32.totalorder %s21, %s24
    %p30 = scmp.eq.s32.totalorder %s11, 0
    %p31 = por %p29, %p30
    %p32 = scmp.ne.s32.totalorder %s21, %s24
    %p33 = scmp.eq.s32.totalorder %s16, 7
    %p34 = por %p32, %p33
    %p35 = scmp.ne.s32.totalorder %s24, %s25
    %p36 = scmp.eq.s32.totalorder %s16, 0
    %p37 = por %p35, %p36
    %p38 = scmp.ne.s32.totalorder %s24, %s25
    %p39 = scmp.eq.s32.totalorder %s17, 7
    %p40 = por %p38, %p39
    %p42 = scmp.ne.s32.totalorder %s25, %s41
    %p43 = scmp.eq.s32.totalorder %s17, 0
    %p44 = por %p42, %p43
    %s46 = sadd.s32 %s45, 1
    %p49 = scmp.eq.s32.totalorder %s11, 7
    %p50 = scmp.ne.s32.totalorder %s45, %s47
    %p51 = scmp.eq.s32.totalorder %s11, 0
    %p52 = por %p50, %p51
    %p53 = scmp.ne.s32.totalorder %s45, %s47
    %p54 = scmp.eq.s32.totalorder %s16, 7
    %p55 = por %p53, %p54
    %p56 = scmp.ne.s32.totalorder %s47, %s48
    %p57 = scmp.eq.s32.totalorder %s16, 0
    %p58 = por %p56, %p57
    %p59 = scmp.ne.s32.totalorder %s47, %s48
    %p60 = scmp.eq.s32.totalorder %s17, 7
    %p61 = por %p59, %p60
    %p63 = scmp.ne.s32.totalorder %s48, %s62
    %p64 = scmp.eq.s32.totalorder %s17, 0
    %p65 = por %p63, %p64
    %s67 = sadd.s32 %s66, 1
    %p70 = scmp.eq.s32.totalorder %s11, 7
    %p71 = scmp.ne.s32.totalorder %s66, %s68
    %p72 = scmp.eq.s32.totalorder %s11, 0
    %p73 = por %p71, %p72
    %p74 = scmp.ne.s32.totalorder %s66, %s68
    %p75 = scmp.eq.s32.totalorder %s16, 7
    %p76 = por %p74, %p75
    %p77 = scmp.ne.s32.totalorder %s68, %s69
    %p78 = scmp.eq.s32.totalorder %s16, 0
    %p79 = por %p77, %p78
    %p80 = scmp.ne.s32.totalorder %s68, %s69
    %p81 = scmp.eq.s32.totalorder %s17, 7
    %p82 = por %p80, %p81
    %p84 = scmp.ne.s32.totalorder %s69, %s83
    %p85 = scmp.eq.s32.totalorder %s17, 0
    %p86 = por %p84, %p85
    %s88 = sadd.s32 %s87, 1
    %p91 = scmp.eq.s32.totalorder %s11, 7
    %p92 = scmp.ne.s32.totalorder %s87, %s89
    %p93 = scmp.eq.s32.totalorder %s11, 0
    %p94 = por %p92, %p93
    %p95 = scmp.ne.s32.totalorder %s87, %s89
    %p96 = scmp.eq.s32.totalorder %s16, 7
    %p97 = por %p95, %p96
    %p98 = scmp.ne.s32.totalorder %s89, %s90
    %p99 = scmp.eq.s32.totalorder %s16, 0
    %p100 = por %p98, %p99
    %p101 = scmp.ne.s32.totalorder %s89, %s90
    %p102 = scmp.eq.s32.totalorder %s17, 7
    %p103 = por %p101, %p102
    %p105 = scmp.ne.s32.totalorder %s90, %s104
    %p106 = scmp.eq.s32.totalorder %s17, 0
    %p107 = por %p105, %p106
    %s109 = sadd.s32 %s108, 1
    %p112 = scmp.eq.s32.totalorder %s11, 7
    %p113 = scmp.ne.s32.totalorder %s108, %s110
    %p114 = scmp.eq.s32.totalorder %s11, 0
    %p115 = por %p113, %p114
    %p116 = scmp.ne.s32.totalorder %s108, %s110
    %p117 = scmp.eq.s32.totalorder %s16, 7
    %p118 = por %p116, %p117
    %p119 = scmp.ne.s32.totalorder %s110, %s111
    %p120 = scmp.eq.s32.totalorder %s16, 0
    %p121 = por %p119, %p120
    %p122 = scmp.ne.s32.totalorder %s110, %s111
    %p123 = scmp.eq.s32.totalorder %s17, 7
    %p124 = por %p122, %p123
    %p126 = scmp.ne.s32.totalorder %s111, %s125
    %p127 = scmp.eq.s32.totalorder %s17, 0
    %p128 = por %p126, %p127
    %p129 = scmp.le.s32.totalorder 1, %s11
    %p130 = scmp.lt.s32.totalorder %s11, 9
    %p131 = pnand %p129, %p130
    %p132 = pneg %p131
    // Predicated region
    $region9: #{seq2seq_forward.2} parent=5 // pred_check
      _
    $region10: #{seq2seq_forward.2} parent=5 // pred_check_branch
      %134 = sbr.rel (%p131) target = $region12
    $region11: #{seq2seq_forward.2} parent=5 // pred_region
      %s135 = ssub.s32 %s11, 1
      // Predicated region
      $region13: #{seq2seq_forward.2} parent=11 // pred_check
        %p136 = pneg %p58
      $region14: #{seq2seq_forward.2} parent=11 // pred_check_branch
        %138 = sbr.rel (%p136) target = $region16
      $region15: #{seq2seq_forward.2} parent=11 // pred_region
        _
      $region16: #{seq2seq_forward.2} parent=11 // pred_fallthru
        _
      // Predicated region
      $region17: #{seq2seq_forward.2} parent=11 // pred_check
        %p139 = pneg %p79
      $region18: #{seq2seq_forward.2} parent=11 // pred_check_branch
        %141 = sbr.rel (%p139) target = $region20
      $region19: #{seq2seq_forward.2} parent=11 // pred_region
        _
      $region20: #{seq2seq_forward.2} parent=11 // pred_fallthru
        _
    $region12: #{seq2seq_forward.2} parent=5 // pred_fallthru
      _
    %p142 = scmp.lt.s32.totalorder %s11, 8
    // Predicated region
    $region21: #{seq2seq_forward.2} parent=5 // pred_check
      %p143 = pneg %p142
    $region22: #{seq2seq_forward.2} parent=5 // pred_check_branch
      %145 = sbr.rel (%p143) target = $region24
    $region23: #{seq2seq_forward.2} parent=5 // pred_region
      // Predicated region
      $region25: #{seq2seq_forward.2} parent=23 // pred_check
        %p146 = pneg %p31
      $region26: #{seq2seq_forward.2} parent=23 // pred_check_branch
        %148 = sbr.rel (%p146) target = $region28
      $region27: #{seq2seq_forward.2} parent=23 // pred_region
        %p149 = scmp.lt.s32.totalorder %s11, 7
        %s150 = scalar_select %p149, %s11, 7
        %s151 = smul.addr %s150, 4
        %s152 = scalar_lea.vmem %s0, %s151
      $region28: #{seq2seq_forward.2} parent=23 // pred_fallthru
        _
    $region24: #{seq2seq_forward.2} parent=5 // pred_fallthru
      _
    %p153 = scmp.le.s32.totalorder 1, %s11
    %p154 = scmp.lt.s32.totalorder %s11, 9
    %p155 = pnand %p153, %p154
    %p156 = pneg %p155
    // Predicated region
    $region29: #{seq2seq_forward.2} parent=5 // pred_check
      _
    $region30: #{seq2seq_forward.2} parent=5 // pred_check_branch
      %158 = sbr.rel (%p155) target = $region32
    $region31: #{seq2seq_forward.2} parent=5 // pred_region
      %s159 = ssub.s32 %s11, 1
      %p160 = scmp.lt.s32.totalorder %s16, 7
      %s161 = scalar_select %p160, %s16, 7
      %s162 = smul.addr %s161, 4
      %s163 = scalar_lea.vmem %s0, %s162
      %p164 = pneg %p37
      %p165 = pneg %p34
      %p166 = pneg %p58
      %p167 = pneg %p55
      %p168 = pneg %p79
      %p169 = pneg %p76
      %p170 = pneg %p100
      %p171 = pneg %p97
      %p172 = pneg %p121
      %p173 = pneg %p118
      %p174 = scmp.lt.s32.totalorder %s16, 7
      %s175 = scalar_select %p174, %s16, 7
      %s176 = smul.addr %s175, 4
      %s177 = scalar_lea.vmem %s0, %s176
      %p178 = scmp.eq.s32.totalorder %s16, 0
      // Predicated region
      $region33: #{seq2seq_forward.2} parent=31 // pred_check
        %p179 = pneg %p178
      $region34: #{seq2seq_forward.2} parent=31 // pred_check_branch
        %181 = sbr.rel (%p179) target = $region36
      $region35: #{seq2seq_forward.2} parent=31 // pred_region
        %182 = vst [vmem:[%s3] sm:$0xff] 0.0
        %183 = vst [vmem:[%s4] sm:$0xff] 0.0
      $region36: #{seq2seq_forward.2} parent=31 // pred_fallthru
        _
      %v184 = vld [vmem:[%s177] sm:$0xf]
      %v185 = vld [vmem:[%s3] sm:$0xff]
      %v186 = vpack.c.bf16 %v185, %v185
      %v187 = vld [vmem:[%s1] sm:$0xff]
      %v188 = vld [vmem:[%s1 + $0x8] sm:$0xff]
      %v189 = vld [vmem:[%s1 + $0x10] sm:$0xff]
      %v190 = vld [vmem:[%s1 + $0x18] sm:$0xff]
      %v191 = vld [vmem:[%s1 + $0x20] sm:$0xff]
      %v192 = vld [vmem:[%s1 + $0x28] sm:$0xff]
      %v193 = vld [vmem:[%s1 + $0x30] sm:$0xff]
      %v194 = vld [vmem:[%s1 + $0x38] sm:$0xff]
      %v195 = vld [vmem:[%s1 + $0x40] sm:$0xff]
      %v196 = vld [vmem:[%s1 + $0x48] sm:$0xff]
      %v197 = vld [vmem:[%s1 + $0x50] sm:$0xff]
      %v198 = vld [vmem:[%s1 + $0x58] sm:$0xff]
      %v199 = vld [vmem:[%s1 + $0x60] sm:$0xff]
      %v200 = vld [vmem:[%s1 + $0x68] sm:$0xff]
      %v201 = vld [vmem:[%s1 + $0x70] sm:$0xff]
      %v202 = vld [vmem:[%s1 + $0x78] sm:$0xff]
      %v203 = vld [vmem:[%s1 + $0x80] sm:$0xff]
      %v204 = vld [vmem:[%s1 + $0x88] sm:$0xff]
      %v205 = vld [vmem:[%s1 + $0x90] sm:$0xff]
      %v206 = vld [vmem:[%s1 + $0x98] sm:$0xff]
      %v207 = vld [vmem:[%s1 + $0xa0] sm:$0xff]
      %v208 = vld [vmem:[%s1 + $0xa8] sm:$0xff]
      %v209 = vld [vmem:[%s1 + $0xb0] sm:$0xff]
      %v210 = vld [vmem:[%s1 + $0xb8] sm:$0xff]
      %v211 = vld [vmem:[%s1 + $0xc0] sm:$0xff]
      %v212 = vld [vmem:[%s1 + $0xc8] sm:$0xff]
      %v213 = vld [vmem:[%s1 + $0xd0] sm:$0xff]
      %v214 = vld [vmem:[%s1 + $0xd8] sm:$0xff]
      %v215 = vld [vmem:[%s1 + $0xe0] sm:$0xff]
      %v216 = vld [vmem:[%s1 + $0xe8] sm:$0xff]
      %v217 = vld [vmem:[%s1 + $0xf0] sm:$0xff]
      %v218 = vld [vmem:[%s1 + $0xf8] sm:$0xff]
      %v219 = vld [vmem:[%s1 + $0x100] sm:$0xff]
      %v220 = vld [vmem:[%s1 + $0x108] sm:$0xff]
      %v221 = vld [vmem:[%s1 + $0x110] sm:$0xff]
      %v222 = vld [vmem:[%s1 + $0x118] sm:$0xff]
      %v223 = vld [vmem:[%s1 + $0x120] sm:$0xff]
      %v224 = vld [vmem:[%s1 + $0x128] sm:$0xff]
      %v225 = vld [vmem:[%s1 + $0x130] sm:$0xff]
      %v226 = vld [vmem:[%s1 + $0x138] sm:$0xff]
      %v227 = vld [vmem:[%s1 + $0x140] sm:$0xff]
      %v228 = vld [vmem:[%s1 + $0x148] sm:$0xff]
      %v229 = vld [vmem:[%s1 + $0x150] sm:$0xff]
      %v230 = vld [vmem:[%s1 + $0x158] sm:$0xff]
      %v231 = vld [vmem:[%s1 + $0x160] sm:$0xff]
      %v232 = vld [vmem:[%s1 + $0x168] sm:$0xff]
      %v233 = vld [vmem:[%s1 + $0x170] sm:$0xff]
      %v234 = vld [vmem:[%s1 + $0x178] sm:$0xff]
      %v235 = vld [vmem:[%s1 + $0x180] sm:$0xff]
      %v236 = vld [vmem:[%s1 + $0x188] sm:$0xff]
      %v237 = vld [vmem:[%s1 + $0x190] sm:$0xff]
      %v238 = vld [vmem:[%s1 + $0x198] sm:$0xff]
      %v239 = vld [vmem:[%s1 + $0x1a0] sm:$0xff]
      %v240 = vld [vmem:[%s1 + $0x1a8] sm:$0xff]
      %v241 = vld [vmem:[%s1 + $0x1b0] sm:$0xff]
      %v242 = vld [vmem:[%s1 + $0x1b8] sm:$0xff]
      %v243 = vld [vmem:[%s1 + $0x1c0] sm:$0xff]
      %v244 = vld [vmem:[%s1 + $0x1c8] sm:$0xff]
      %v245 = vld [vmem:[%s1 + $0x1d0] sm:$0xff]
      %v246 = vld [vmem:[%s1 + $0x1d8] sm:$0xff]
      %v247 = vld [vmem:[%s1 + $0x1e0] sm:$0xff]
      %v248 = vld [vmem:[%s1 + $0x1e8] sm:$0xff]
      %v249 = vld [vmem:[%s1 + $0x1f0] sm:$0xff]
      %v250 = vld [vmem:[%s1 + $0x1f8] sm:$0xff]
      %v251 = vld [vmem:[%s2] sm:$0xf]
      %v253 = vlaneseq
      %v254 = vshrl.u32 %v253, 7
      %v255 = vsub.s32 0, %v254
      %v256 = vrot.slane %v251, %v255
      %v257 = vlaneseq
      %v258 = vshrl.u32 %v257, 7
      %v259 = vsub.s32 1, %v258
      %v260 = vrot.slane %v251, %v259
      %v261 = vlaneseq
      %v262 = vshrl.u32 %v261, 7
      %v263 = vsub.s32 2, %v262
      %v264 = vrot.slane %v251, %v263
      %v265 = vlaneseq
      %v266 = vshrl.u32 %v265, 7
      %v267 = vsub.s32 3, %v266
      %v268 = vrot.slane %v251, %v267
      %v337 = vunpack.c.l.b16 %v187
      %v338 = vunpack.c.h.b16 %v187
      %v339 = vunpack.c.l.b16 %v188
      %v340 = vunpack.c.h.b16 %v188
      %v341 = vunpack.c.l.b16 %v189
      %v342 = vunpack.c.h.b16 %v189
      %v343 = vunpack.c.l.b16 %v190
      %v344 = vunpack.c.h.b16 %v190
      %v345 = vunpack.c.l.b16 %v191
      %v346 = vunpack.c.h.b16 %v191
      %v347 = vunpack.c.l.b16 %v192
      %v348 = vunpack.c.h.b16 %v192
      %v349 = vunpack.c.l.b16 %v193
      %v350 = vunpack.c.h.b16 %v193
      %v351 = vunpack.c.l.b16 %v194
      %v352 = vunpack.c.h.b16 %v194
      %v353 = vunpack.c.l.b16 %v195
      %v354 = vunpack.c.h.b16 %v195
      %v355 = vunpack.c.l.b16 %v196
      %v356 = vunpack.c.h.b16 %v196
      %v357 = vunpack.c.l.b16 %v197
      %v358 = vunpack.c.h.b16 %v197
      %v359 = vunpack.c.l.b16 %v198
      %v360 = vunpack.c.h.b16 %v198
      %v361 = vunpack.c.l.b16 %v199
      %v362 = vunpack.c.h.b16 %v199
      %v363 = vunpack.c.l.b16 %v200
      %v364 = vunpack.c.h.b16 %v200
      %v365 = vunpack.c.l.b16 %v201
      %v366 = vunpack.c.h.b16 %v201
      %v367 = vunpack.c.l.b16 %v202
      %v368 = vunpack.c.h.b16 %v202
      %v369 = vunpack.c.l.b16 %v203
      %v370 = vunpack.c.h.b16 %v203
      %v371 = vunpack.c.l.b16 %v204
      %v372 = vunpack.c.h.b16 %v204
      %v373 = vunpack.c.l.b16 %v205
      %v374 = vunpack.c.h.b16 %v205
      %v375 = vunpack.c.l.b16 %v206
      %v376 = vunpack.c.h.b16 %v206
      %v377 = vunpack.c.l.b16 %v207
      %v378 = vunpack.c.h.b16 %v207
      %v379 = vunpack.c.l.b16 %v208
      %v380 = vunpack.c.h.b16 %v208
      %v381 = vunpack.c.l.b16 %v209
      %v382 = vunpack.c.h.b16 %v209
      %v383 = vunpack.c.l.b16 %v210
      %v384 = vunpack.c.h.b16 %v210
      %v385 = vunpack.c.l.b16 %v211
      %v386 = vunpack.c.h.b16 %v211
      %v387 = vunpack.c.l.b16 %v212
      %v388 = vunpack.c.h.b16 %v212
      %v389 = vunpack.c.l.b16 %v213
      %v390 = vunpack.c.h.b16 %v213
      %v391 = vunpack.c.l.b16 %v214
      %v392 = vunpack.c.h.b16 %v214
      %v393 = vunpack.c.l.b16 %v215
      %v394 = vunpack.c.h.b16 %v215
      %v395 = vunpack.c.l.b16 %v216
      %v396 = vunpack.c.h.b16 %v216
      %v397 = vunpack.c.l.b16 %v217
      %v398 = vunpack.c.h.b16 %v217
      %v399 = vunpack.c.l.b16 %v218
      %v400 = vunpack.c.h.b16 %v218
      %v401 = vunpack.c.l.b16 %v219
      %v402 = vunpack.c.h.b16 %v219
      %v403 = vunpack.c.l.b16 %v220
      %v404 = vunpack.c.h.b16 %v220
      %v405 = vunpack.c.l.b16 %v221
      %v406 = vunpack.c.h.b16 %v221
      %v407 = vunpack.c.l.b16 %v222
      %v408 = vunpack.c.h.b16 %v222
      %v409 = vunpack.c.l.b16 %v223
      %v410 = vunpack.c.h.b16 %v223
      %v411 = vunpack.c.l.b16 %v224
      %v412 = vunpack.c.h.b16 %v224
      %v413 = vunpack.c.l.b16 %v225
      %v414 = vunpack.c.h.b16 %v225
      %v415 = vunpack.c.l.b16 %v226
      %v416 = vunpack.c.h.b16 %v226
      %v417 = vunpack.c.l.b16 %v227
      %v418 = vunpack.c.h.b16 %v227
      %v419 = vunpack.c.l.b16 %v228
      %v420 = vunpack.c.h.b16 %v228
      %v421 = vunpack.c.l.b16 %v229
      %v422 = vunpack.c.h.b16 %v229
      %v423 = vunpack.c.l.b16 %v230
      %v424 = vunpack.c.h.b16 %v230
      %v425 = vunpack.c.l.b16 %v231
      %v426 = vunpack.c.h.b16 %v231
      %v427 = vunpack.c.l.b16 %v232
      %v428 = vunpack.c.h.b16 %v232
      %v429 = vunpack.c.l.b16 %v233
      %v430 = vunpack.c.h.b16 %v233
      %v431 = vunpack.c.l.b16 %v234
      %v432 = vunpack.c.h.b16 %v234
      %v433 = vunpack.c.l.b16 %v235
      %v434 = vunpack.c.h.b16 %v235
      %v435 = vunpack.c.l.b16 %v236
      %v436 = vunpack.c.h.b16 %v236
      %v437 = vunpack.c.l.b16 %v237
      %v438 = vunpack.c.h.b16 %v237
      %v439 = vunpack.c.l.b16 %v238
      %v440 = vunpack.c.h.b16 %v238
      %v441 = vunpack.c.l.b16 %v239
      %v442 = vunpack.c.h.b16 %v239
      %v443 = vunpack.c.l.b16 %v240
      %v444 = vunpack.c.h.b16 %v240
      %v445 = vunpack.c.l.b16 %v241
      %v446 = vunpack.c.h.b16 %v241
      %v447 = vunpack.c.l.b16 %v242
      %v448 = vunpack.c.h.b16 %v242
      %v449 = vunpack.c.l.b16 %v243
      %v450 = vunpack.c.h.b16 %v243
      %v451 = vunpack.c.l.b16 %v244
      %v452 = vunpack.c.h.b16 %v244
      %v453 = vunpack.c.l.b16 %v245
      %v454 = vunpack.c.h.b16 %v245
      %v455 = vunpack.c.l.b16 %v246
      %v456 = vunpack.c.h.b16 %v246
      %v457 = vunpack.c.l.b16 %v247
      %v458 = vunpack.c.h.b16 %v247
      %v459 = vunpack.c.l.b16 %v248
      %v460 = vunpack.c.h.b16 %v248
      %v461 = vunpack.c.l.b16 %v249
      %v462 = vunpack.c.h.b16 %v249
      %v463 = vunpack.c.l.b16 %v250
      %v464 = vunpack.c.h.b16 %v250
      %v465 = vpack.c.b16 %v341, %v337
      %v466 = vpack.c.b16 %v342, %v338
      %v467 = vpack.c.b16 %v343, %v339
      %v468 = vpack.c.b16 %v344, %v340
      %v469 = vpack.c.b16 %v349, %v345
      %v470 = vpack.c.b16 %v350, %v346
      %v471 = vpack.c.b16 %v351, %v347
      %v472 = vpack.c.b16 %v352, %v348
      %v473 = vpack.c.b16 %v357, %v353
      %v474 = vpack.c.b16 %v358, %v354
      %v475 = vpack.c.b16 %v359, %v355
      %v476 = vpack.c.b16 %v360, %v356
      %v477 = vpack.c.b16 %v365, %v361
      %v478 = vpack.c.b16 %v366, %v362
      %v479 = vpack.c.b16 %v367, %v363
      %v480 = vpack.c.b16 %v368, %v364
      %v481 = vpack.c.b16 %v373, %v369
      %v482 = vpack.c.b16 %v374, %v370
      %v483 = vpack.c.b16 %v375, %v371
      %v484 = vpack.c.b16 %v376, %v372
      %v485 = vpack.c.b16 %v381, %v377
      %v486 = vpack.c.b16 %v382, %v378
      %v487 = vpack.c.b16 %v383, %v379
      %v488 = vpack.c.b16 %v384, %v380
      %v489 = vpack.c.b16 %v389, %v385
      %v490 = vpack.c.b16 %v390, %v386
      %v491 = vpack.c.b16 %v391, %v387
      %v492 = vpack.c.b16 %v392, %v388
      %v493 = vpack.c.b16 %v397, %v393
      %v494 = vpack.c.b16 %v398, %v394
      %v495 = vpack.c.b16 %v399, %v395
      %v496 = vpack.c.b16 %v400, %v396
      %v497 = vpack.c.b16 %v405, %v401
      %v498 = vpack.c.b16 %v406, %v402
      %v499 = vpack.c.b16 %v407, %v403
      %v500 = vpack.c.b16 %v408, %v404
      %v501 = vpack.c.b16 %v413, %v409
      %v502 = vpack.c.b16 %v414, %v410
      %v503 = vpack.c.b16 %v415, %v411
      %v504 = vpack.c.b16 %v416, %v412
      %v505 = vpack.c.b16 %v421, %v417
      %v506 = vpack.c.b16 %v422, %v418
      %v507 = vpack.c.b16 %v423, %v419
      %v508 = vpack.c.b16 %v424, %v420
      %v509 = vpack.c.b16 %v429, %v425
      %v510 = vpack.c.b16 %v430, %v426
      %v511 = vpack.c.b16 %v431, %v427
      %v512 = vpack.c.b16 %v432, %v428
      %v513 = vpack.c.b16 %v437, %v433
      %v514 = vpack.c.b16 %v438, %v434
      %v515 = vpack.c.b16 %v439, %v435
      %v516 = vpack.c.b16 %v440, %v436
      %v517 = vpack.c.b16 %v445, %v441
      %v518 = vpack.c.b16 %v446, %v442
      %v519 = vpack.c.b16 %v447, %v443
      %v520 = vpack.c.b16 %v448, %v444
      %v521 = vpack.c.b16 %v453, %v449
      %v522 = vpack.c.b16 %v454, %v450
      %v523 = vpack.c.b16 %v455, %v451
      %v524 = vpack.c.b16 %v456, %v452
      %v525 = vpack.c.b16 %v461, %v457
      %v526 = vpack.c.b16 %v462, %v458
      %v527 = vpack.c.b16 %v463, %v459
      %v528 = vpack.c.b16 %v464, %v460
      %593 = vmatprep.subr.bf16.mxu0 %v466
      %594 = vmatpush1.bf16.msra.mxu0 %v465
      %595 = vmatprep.subr.bf16.mxu0 %v470
      %596 = vmatpush1.bf16.msra.mxu0 %v469
      %597 = vmatprep.subr.bf16.mxu0 %v474
      %598 = vmatpush1.bf16.msra.mxu0 %v473
      %599 = vmatprep.subr.bf16.mxu0 %v478
      %600 = vmatpush1.bf16.msra.mxu0 %v477
      %601 = vmatprep.subr.bf16.mxu0 %v482
      %602 = vmatpush1.bf16.msra.mxu0 %v481
      %603 = vmatprep.subr.bf16.mxu0 %v486
      %604 = vmatpush1.bf16.msra.mxu0 %v485
      %605 = vmatprep.subr.bf16.mxu0 %v490
      %606 = vmatpush1.bf16.msra.mxu0 %v489
      %607 = vmatprep.subr.bf16.mxu0 %v494
      %608 = vmatpush1.bf16.msra.mxu0 %v493
      %609 = vmatprep.subr.bf16.mxu0 %v498
      %610 = vmatpush1.bf16.msra.mxu0 %v497
      %611 = vmatprep.subr.bf16.mxu0 %v502
      %612 = vmatpush1.bf16.msra.mxu0 %v501
      %613 = vmatprep.subr.bf16.mxu0 %v506
      %614 = vmatpush1.bf16.msra.mxu0 %v505
      %615 = vmatprep.subr.bf16.mxu0 %v510
      %616 = vmatpush1.bf16.msra.mxu0 %v509
      %617 = vmatprep.subr.bf16.mxu0 %v514
      %618 = vmatpush1.bf16.msra.mxu0 %v513
      %619 = vmatprep.subr.bf16.mxu0 %v518
      %620 = vmatpush1.bf16.msra.mxu0 %v517
      %621 = vmatprep.subr.bf16.mxu0 %v522
      %622 = vmatpush1.bf16.msra.mxu0 %v521
      %623 = vmatprep.subr.bf16.mxu0 %v526
      %624 = vmatpush1.bf16.msra.mxu0 %v525
      %625 = vmatprep.mubr.bf16.mxu0 %v186
      %626 = vmatmul.mubr.bf16.gmra.mrb[0].mxu0 %v184
      %v627 = vpop.f32.mrb[0].mxu0
      %v628 = vadd.f32 %v256, %v627
      %v629 = vpop.f32.mrb[0].mxu0
      %v630 = vadd.f32 %v260, %v629
      %v631 = vpop.f32.mrb[0].mxu0
      %v632 = vpop.f32.mrb[0].mxu0
      %633 = vdwg.mxu0
      %634 = vmatprep.subr.bf16.mxu0 %v468
      %635 = vmatpush1.bf16.msra.mxu0 %v467
      %636 = vmatprep.subr.bf16.mxu0 %v472
      %637 = vmatpush1.bf16.msra.mxu0 %v471
      %638 = vmatprep.subr.bf16.mxu0 %v476
      %639 = vmatpush1.bf16.msra.mxu0 %v475
      %640 = vmatprep.subr.bf16.mxu0 %v480
      %641 = vmatpush1.bf16.msra.mxu0 %v479
      %642 = vmatprep.subr.bf16.mxu0 %v484
      %643 = vmatpush1.bf16.msra.mxu0 %v483
      %644 = vmatprep.subr.bf16.mxu0 %v488
      %645 = vmatpush1.bf16.msra.mxu0 %v487
      %646 = vmatprep.subr.bf16.mxu0 %v492
      %647 = vmatpush1.bf16.msra.mxu0 %v491
      %648 = vmatprep.subr.bf16.mxu0 %v496
      %649 = vmatpush1.bf16.msra.mxu0 %v495
      %650 = vmatprep.subr.bf16.mxu0 %v500
      %651 = vmatpush1.bf16.msra.mxu0 %v499
      %652 = vmatprep.subr.bf16.mxu0 %v504
      %653 = vmatpush1.bf16.msra.mxu0 %v503
      %654 = vmatprep.subr.bf16.mxu0 %v508
      %655 = vmatpush1.bf16.msra.mxu0 %v507
      %656 = vmatprep.subr.bf16.mxu0 %v512
      %657 = vmatpush1.bf16.msra.mxu0 %v511
      %658 = vmatprep.subr.bf16.mxu0 %v516
      %659 = vmatpush1.bf16.msra.mxu0 %v515
      %660 = vmatprep.subr.bf16.mxu0 %v520
      %661 = vmatpush1.bf16.msra.mxu0 %v519
      %662 = vmatprep.subr.bf16.mxu0 %v524
      %663 = vmatpush1.bf16.msra.mxu0 %v523
      %664 = vmatprep.subr.bf16.mxu0 %v528
      %665 = vmatpush1.bf16.msra.mxu0 %v527
      %666 = vmatprep.mubr.bf16.mxu0 %v186
      %667 = vmatmul.mubr.bf16.gmra.mrb[0].mxu0 %v184
      %v668 = vpop.f32.mrb[0].mxu0
      %v669 = vadd.f32 %v264, %v668
      %v670 = vpop.f32.mrb[0].mxu0
      %v671 = vadd.f32 %v268, %v670
      %v672 = vpop.f32.mrb[0].mxu0
      %v673 = vpop.f32.mrb[0].mxu0
      %674 = vdwg.mxu0
      %v675 = vxor.u32 %v628, 2147483648
      %v676 = vmul.f32 %v675, 1.442695
      %v677 = vpow.pop %v676
      %v678 = vadd.f32 %v677, 1.0
      %v679 = vrcp.pop %v678
      %v680 = vmul.f32 1.0, %v679
      %v681 = vxor.u32 %v630, 2147483648
      %v682 = vmul.f32 %v681, 1.442695
      %v683 = vpow.pop %v682
      %v684 = vadd.f32 %v683, 1.0
      %v685 = vrcp.pop %v684
      %v686 = vmul.f32 1.0, %v685
      %v687 = vtanh.pop %v669
      %v688 = vxor.u32 %v671, 2147483648
      %v689 = vmul.f32 %v688, 1.442695
      %v690 = vpow.pop %v689
      %v691 = vadd.f32 %v690, 1.0
      %v692 = vrcp.pop %v691
      %v693 = vmul.f32 1.0, %v692
      %v694 = vld [vmem:[%s4] sm:$0xff]
      %v695 = vmul.f32 %v686, %v694
      %v696 = vmul.f32 %v680, %v687
      %v697 = vadd.f32 %v695, %v696
      %v698 = vtanh.pop %v697
      %v699 = vmul.f32 %v693, %v698
      %700 = vst [vmem:[%s4] sm:$0xff] %v697
      %701 = vst [vmem:[%s3] sm:$0xff] %v699
      // Predicated region
      $region37: #{seq2seq_forward.2} parent=31 // pred_check
        %p702 = pneg %p97
      $region38: #{seq2seq_forward.2} parent=31 // pred_check_branch
        %704 = sbr.rel (%p702) target = $region40
      $region39: #{seq2seq_forward.2} parent=31 // pred_region
        _
      $region40: #{seq2seq_forward.2} parent=31 // pred_fallthru
        _
      // Predicated region
      $region41: #{seq2seq_forward.2} parent=31 // pred_check
        %p705 = pneg %p118
      $region42: #{seq2seq_forward.2} parent=31 // pred_check_branch
        %707 = sbr.rel (%p705) target = $region44
      $region43: #{seq2seq_forward.2} parent=31 // pred_region
        _
      $region44: #{seq2seq_forward.2} parent=31 // pred_fallthru
        _
      // Predicated region
      $region45: #{seq2seq_forward.2} parent=31 // pred_check
        %p708 = pneg %p97
      $region46: #{seq2seq_forward.2} parent=31 // pred_check_branch
        %710 = sbr.rel (%p708) target = $region48
      $region47: #{seq2seq_forward.2} parent=31 // pred_region
        _
      $region48: #{seq2seq_forward.2} parent=31 // pred_fallthru
        _
      // Predicated region
      $region49: #{seq2seq_forward.2} parent=31 // pred_check
        %p711 = pneg %p118
      $region50: #{seq2seq_forward.2} parent=31 // pred_check_branch
        %713 = sbr.rel (%p711) target = $region52
      $region51: #{seq2seq_forward.2} parent=31 // pred_region
        _
      $region52: #{seq2seq_forward.2} parent=31 // pred_fallthru
        _
    $region32: #{seq2seq_forward.2} parent=5 // pred_fallthru
      _
    %p714 = scmp.le.s32.totalorder 2, %s11
    // Predicated region
    $region53: #{seq2seq_forward.2} parent=5 // pred_check
      %p715 = pneg %p714
    $region54: #{seq2seq_forward.2} parent=5 // pred_check_branch
      %717 = sbr.rel (%p715) target = $region56
    $region55: #{seq2seq_forward.2} parent=5 // pred_region
      %s718 = ssub.s32 %s11, 2
    $region56: #{seq2seq_forward.2} parent=5 // pred_fallthru
      _
  $region6: #{seq2seq_forward.2} parent=0 // loop_footer
    %s15 = sadd.s32 1, %s11
  $region7: #{seq2seq_forward.2} parent=0 // loop_footer_branch
    %10 = sbr.rel target = $region3
  $region8: #{seq2seq_forward.2} parent=0 // loop_exit
    _

// kernel: seq2seq_forward.3
$region0: #{seq2seq_forward.3}
  #allocation0 [shape = 'u32[]', space=smem, size = 0x4, offset = 0x4, fixed_abs, tag = 'smem constant byte address 0x4 - core index']
  #allocation1 [shape = 'u32[144,128]{1,0:T(1,128)}', space=vmem, size = 0x12000, scoped, tag = 'internal scratch']
  #allocation2 [shape = 'f32[8,128]{1,0:T(8,128)}', space=vmem, size = 0x1000, scoped, tag = 'scratch operand']
  #allocation3 [shape = 'f32[8,128]{1,0:T(8,128)}', space=vmem, size = 0x1000, scoped, tag = 'scratch operand']
  #allocation4 [shape = 'bf16[8,128]{1,0:T(8,128)(2,1)}', space=vmem, size = 0x800, scoped, tag = 'scratch operand']
  #allocation5 [shape = 's32[1]{0}', space=sflag, size = 0x4, scoped, tag = 'scoped memory for seq2seq_forward.3']
  #allocation6 [shape = 'u8[512]{0}', space=smem, size = 0x200, scoped, tag = 'prefetched SMEM operand 0']
  %s0 = inlined_call_operand.vmem [shape: s32[7], index: 0, kind: input, shape index: {}]
  %s1 = inlined_call_operand.vmem [shape: bf16[7,8,128], index: 1, kind: input, shape index: {}]
  %s2 = inlined_call_operand.vmem [shape: f32[8,128], index: 2, kind: input, shape index: {}]
  %s3 = inlined_call_operand.vmem [shape: f32[8,128], index: 3, kind: input, shape index: {}]
  %s4 = inlined_call_operand.vmem [shape: bf16[256,512], index: 4, kind: input, shape index: {}]
  %s5 = inlined_call_operand.vmem [shape: f32[1,512], index: 5, kind: input, shape index: {}]
  %s6 = inlined_call_operand.vmem [shape: bf16[128,256], index: 6, kind: input, shape index: {}]
  %s7 = inlined_call_operand.vmem [shape: f32[1,256], index: 7, kind: input, shape index: {}]
  %s8 = inlined_call_operand.vmem [shape: bf16[256,128], index: 8, kind: input, shape index: {}]
  %s9 = inlined_call_operand.vmem [shape: f32[7,8,256], index: 9, kind: output, shape index: {}]
  %s10 = sld [smem:[#allocation0]]
  $region69: #{seq2seq_forward.3} parent=0
    _
  %s12 = ssub.s32 1, %s10
  %s13 = scalar_select 0, %s12, %s10
  %s14 = sshll.u32 %s0, 4
  %s15 = int_to_ptr.vmem [resolvable:$true] %s14
  %17 = dma.vmem_to_smem %s15, 16, [#allocation6], [#allocation5]
  %18 = dma.done [#allocation5], 16
  %19 = sfence
  loop: start=0, step=1, limit=9
  $region2: #{seq2seq_forward.3} parent=0 // loop_pre_header
    _
  $region3: #{seq2seq_forward.3} parent=0 // loop_header
    %s21 = sphi 0, %s25
    %p22 = scmp.ge.s32.totalorder %s21, 9
    %s31 = sphi 0, %s33
    %s34 = sphi 0, %s31
    %s35 = sphi 0, %s34
    %s51 = sphi 0, %s35
    %s55 = sphi 0, %s55
    %s57 = sphi 0, %s55
    %s58 = sphi 0, %s57
    %s72 = sphi 0, %s58
    %s76 = sphi 0, %s76
    %s78 = sphi 0, %s76
    %s79 = sphi 0, %s78
    %s93 = sphi 0, %s79
    %s97 = sphi 0, %s97
    %s99 = sphi 0, %s97
    %s100 = sphi 0, %s99
    %s114 = sphi 0, %s100
    %s118 = sphi 0, %s118
    %s120 = sphi 0, %s118
    %s121 = sphi 0, %s120
    %s135 = sphi 0, %s121
    %s139 = sphi 0, %s139
    %s141 = sphi 0, %s139
    %s142 = sphi 0, %s141
    %s156 = sphi 0, %s142
    %s160 = sphi 0, %s160
    %s162 = sphi 0, %s160
    %s163 = sphi 0, %s162
    %s177 = sphi 0, %s163
    %s181 = sphi 0, %s181
    %s183 = sphi 0, %s181
    %s184 = sphi 0, %s183
    %s198 = sphi 0, %s184
    %s204 = sphi 0, %s206
    %s207 = sphi 0, %s204
    %s208 = sphi 0, %s207
    %s224 = sphi 0, %s208
  $region4: #{seq2seq_forward.3} parent=0 // loop_header_branch
    %24 = sbr.rel (%p22) target = $region8
  $region5: #{seq2seq_forward.3} parent=0 // loop_body
    %s26 = ssub.s32 %s21, 1
    %s27 = ssub.s32 %s21, 2
    %s28 = sadd.s32 %s21, 1
    %s29 = ssub.s32 %s21, %s28
    %p30 = scmp.eq.s32.totalorder %s29, 0
    %s32 = sadd.s32 %s31, 1
    %s33 = scalar_select %p30, %s31, %s32
    %p36 = pneg %p30
    %p37 = scmp.eq.s32.totalorder %s21, 6
    %p38 = por %p36, %p37
    %p39 = scmp.ne.s32.totalorder %s31, %s34
    %p40 = scmp.eq.s32.totalorder %s21, 0
    %p41 = por %p39, %p40
    %p42 = scmp.ne.s32.totalorder %s31, %s34
    %p43 = scmp.eq.s32.totalorder %s26, 6
    %p44 = por %p42, %p43
    %p45 = scmp.ne.s32.totalorder %s34, %s35
    %p46 = scmp.eq.s32.totalorder %s26, 0
    %p47 = por %p45, %p46
    %p48 = scmp.ne.s32.totalorder %s34, %s35
    %p49 = scmp.eq.s32.totalorder %s27, 6
    %p50 = por %p48, %p49
    %p52 = scmp.ne.s32.totalorder %s35, %s51
    %p53 = scmp.eq.s32.totalorder %s27, 0
    %p54 = por %p52, %p53
    %s56 = sadd.s32 %s55, 1
    %p59 = scmp.eq.s32.totalorder %s21, 6
    %p60 = scmp.ne.s32.totalorder %s55, %s57
    %p61 = scmp.eq.s32.totalorder %s21, 0
    %p62 = por %p60, %p61
    %p63 = scmp.ne.s32.totalorder %s55, %s57
    %p64 = scmp.eq.s32.totalorder %s26, 6
    %p65 = por %p63, %p64
    %p66 = scmp.ne.s32.totalorder %s57, %s58
    %p67 = scmp.eq.s32.totalorder %s26, 0
    %p68 = por %p66, %p67
    %p69 = scmp.ne.s32.totalorder %s57, %s58
    %p70 = scmp.eq.s32.totalorder %s27, 6
    %p71 = por %p69, %p70
    %p73 = scmp.ne.s32.totalorder %s58, %s72
    %p74 = scmp.eq.s32.totalorder %s27, 0
    %p75 = por %p73, %p74
    %s77 = sadd.s32 %s76, 1
    %p80 = scmp.eq.s32.totalorder %s21, 6
    %p81 = scmp.ne.s32.totalorder %s76, %s78
    %p82 = scmp.eq.s32.totalorder %s21, 0
    %p83 = por %p81, %p82
    %p84 = scmp.ne.s32.totalorder %s76, %s78
    %p85 = scmp.eq.s32.totalorder %s26, 6
    %p86 = por %p84, %p85
    %p87 = scmp.ne.s32.totalorder %s78, %s79
    %p88 = scmp.eq.s32.totalorder %s26, 0
    %p89 = por %p87, %p88
    %p90 = scmp.ne.s32.totalorder %s78, %s79
    %p91 = scmp.eq.s32.totalorder %s27, 6
    %p92 = por %p90, %p91
    %p94 = scmp.ne.s32.totalorder %s79, %s93
    %p95 = scmp.eq.s32.totalorder %s27, 0
    %p96 = por %p94, %p95
    %s98 = sadd.s32 %s97, 1
    %p101 = scmp.eq.s32.totalorder %s21, 6
    %p102 = scmp.ne.s32.totalorder %s97, %s99
    %p103 = scmp.eq.s32.totalorder %s21, 0
    %p104 = por %p102, %p103
    %p105 = scmp.ne.s32.totalorder %s97, %s99
    %p106 = scmp.eq.s32.totalorder %s26, 6
    %p107 = por %p105, %p106
    %p108 = scmp.ne.s32.totalorder %s99, %s100
    %p109 = scmp.eq.s32.totalorder %s26, 0
    %p110 = por %p108, %p109
    %p111 = scmp.ne.s32.totalorder %s99, %s100
    %p112 = scmp.eq.s32.totalorder %s27, 6
    %p113 = por %p111, %p112
    %p115 = scmp.ne.s32.totalorder %s100, %s114
    %p116 = scmp.eq.s32.totalorder %s27, 0
    %p117 = por %p115, %p116
    %s119 = sadd.s32 %s118, 1
    %p122 = scmp.eq.s32.totalorder %s21, 6
    %p123 = scmp.ne.s32.totalorder %s118, %s120
    %p124 = scmp.eq.s32.totalorder %s21, 0
    %p125 = por %p123, %p124
    %p126 = scmp.ne.s32.totalorder %s118, %s120
    %p127 = scmp.eq.s32.totalorder %s26, 6
    %p128 = por %p126, %p127
    %p129 = scmp.ne.s32.totalorder %s120, %s121
    %p130 = scmp.eq.s32.totalorder %s26, 0
    %p131 = por %p129, %p130
    %p132 = scmp.ne.s32.totalorder %s120, %s121
    %p133 = scmp.eq.s32.totalorder %s27, 6
    %p134 = por %p132, %p133
    %p136 = scmp.ne.s32.totalorder %s121, %s135
    %p137 = scmp.eq.s32.totalorder %s27, 0
    %p138 = por %p136, %p137
    %s140 = sadd.s32 %s139, 1
    %p143 = scmp.eq.s32.totalorder %s21, 6
    %p144 = scmp.ne.s32.totalorder %s139, %s141
    %p145 = scmp.eq.s32.totalorder %s21, 0
    %p146 = por %p144, %p145
    %p147 = scmp.ne.s32.totalorder %s139, %s141
    %p148 = scmp.eq.s32.totalorder %s26, 6
    %p149 = por %p147, %p148
    %p150 = scmp.ne.s32.totalorder %s141, %s142
    %p151 = scmp.eq.s32.totalorder %s26, 0
    %p152 = por %p150, %p151
    %p153 = scmp.ne.s32.totalorder %s141, %s142
    %p154 = scmp.eq.s32.totalorder %s27, 6
    %p155 = por %p153, %p154
    %p157 = scmp.ne.s32.totalorder %s142, %s156
    %p158 = scmp.eq.s32.totalorder %s27, 0
    %p159 = por %p157, %p158
    %s161 = sadd.s32 %s160, 1
    %p164 = scmp.eq.s32.totalorder %s21, 6
    %p165 = scmp.ne.s32.totalorder %s160, %s162
    %p166 = scmp.eq.s32.totalorder %s21, 0
    %p167 = por %p165, %p166
    %p168 = scmp.ne.s32.totalorder %s160, %s162
    %p169 = scmp.eq.s32.totalorder %s26, 6
    %p170 = por %p168, %p169
    %p171 = scmp.ne.s32.totalorder %s162, %s163
    %p172 = scmp.eq.s32.totalorder %s26, 0
    %p173 = por %p171, %p172
    %p174 = scmp.ne.s32.totalorder %s162, %s163
    %p175 = scmp.eq.s32.totalorder %s27, 6
    %p176 = por %p174, %p175
    %p178 = scmp.ne.s32.totalorder %s163, %s177
    %p179 = scmp.eq.s32.totalorder %s27, 0
    %p180 = por %p178, %p179
    %s182 = sadd.s32 %s181, 1
    %p185 = scmp.eq.s32.totalorder %s21, 6
    %p186 = scmp.ne.s32.totalorder %s181, %s183
    %p187 = scmp.eq.s32.totalorder %s21, 0
    %p188 = por %p186, %p187
    %p189 = scmp.ne.s32.totalorder %s181, %s183
    %p190 = scmp.eq.s32.totalorder %s26, 6
    %p191 = por %p189, %p190
    %p192 = scmp.ne.s32.totalorder %s183, %s184
    %p193 = scmp.eq.s32.totalorder %s26, 0
    %p194 = por %p192, %p193
    %p195 = scmp.ne.s32.totalorder %s183, %s184
    %p196 = scmp.eq.s32.totalorder %s27, 6
    %p197 = por %p195, %p196
    %p199 = scmp.ne.s32.totalorder %s184, %s198
    %p200 = scmp.eq.s32.totalorder %s27, 0
    %p201 = por %p199, %p200
    %s202 = ssub.s32 %s21, %s28
    %p203 = scmp.eq.s32.totalorder %s202, 0
    %s205 = sadd.s32 %s204, 1
    %s206 = scalar_select %p203, %s204, %s205
    %p209 = pneg %p203
    %p210 = scmp.eq.s32.totalorder %s21, 6
    %p211 = por %p209, %p210
    %p212 = scmp.ne.s32.totalorder %s204, %s207
    %p213 = scmp.eq.s32.totalorder %s21, 0
    %p214 = por %p212, %p213
    %p215 = scmp.ne.s32.totalorder %s204, %s207
    %p216 = scmp.eq.s32.totalorder %s26, 6
    %p217 = por %p215, %p216
    %p218 = scmp.ne.s32.totalorder %s207, %s208
    %p219 = scmp.eq.s32.totalorder %s26, 0
    %p220 = por %p218, %p219
    %p221 = scmp.ne.s32.totalorder %s207, %s208
    %p222 = scmp.eq.s32.totalorder %s27, 6
    %p223 = por %p221, %p222
    %p225 = scmp.ne.s32.totalorder %s208, %s224
    %p226 = scmp.eq.s32.totalorder %s27, 0
    %p227 = por %p225, %p226
    %p228 = scmp.le.s32.totalorder 1, %s21
    %p229 = scmp.lt.s32.totalorder %s21, 8
    %p230 = pnand %p228, %p229
    %p231 = pneg %p230
    // Predicated region
    $region9: #{seq2seq_forward.3} parent=5 // pred_check
      _
    $region10: #{seq2seq_forward.3} parent=5 // pred_check_branch
      %233 = sbr.rel (%p230) target = $region12
    $region11: #{seq2seq_forward.3} parent=5 // pred_region
      %s234 = ssub.s32 %s21, 1
      // Predicated region
      $region13: #{seq2seq_forward.3} parent=11 // pred_check
        %p235 = pneg %p68
      $region14: #{seq2seq_forward.3} parent=11 // pred_check_branch
        %237 = sbr.rel (%p235) target = $region16
      $region15: #{seq2seq_forward.3} parent=11 // pred_region
        _
      $region16: #{seq2seq_forward.3} parent=11 // pred_fallthru
        _
      // Predicated region
      $region17: #{seq2seq_forward.3} parent=11 // pred_check
        %p238 = pneg %p89
      $region18: #{seq2seq_forward.3} parent=11 // pred_check_branch
        %240 = sbr.rel (%p238) target = $region20
      $region19: #{seq2seq_forward.3} parent=11 // pred_region
        _
      $region20: #{seq2seq_forward.3} parent=11 // pred_fallthru
        _
      // Predicated region
      $region21: #{seq2seq_forward.3} parent=11 // pred_check
        %p241 = pneg %p110
      $region22: #{seq2seq_forward.3} parent=11 // pred_check_branch
        %243 = sbr.rel (%p241) target = $region24
      $region23: #{seq2seq_forward.3} parent=11 // pred_region
        _
      $region24: #{seq2seq_forward.3} parent=11 // pred_fallthru
        _
      // Predicated region
      $region25: #{seq2seq_forward.3} parent=11 // pred_check
        %p244 = pneg %p131
      $region26: #{seq2seq_forward.3} parent=11 // pred_check_branch
        %246 = sbr.rel (%p244) target = $region28
      $region27: #{seq2seq_forward.3} parent=11 // pred_region
        _
      $region28: #{seq2seq_forward.3} parent=11 // pred_fallthru
        _
      // Predicated region
      $region29: #{seq2seq_forward.3} parent=11 // pred_check
        %p247 = pneg %p152
      $region30: #{seq2seq_forward.3} parent=11 // pred_check_branch
        %249 = sbr.rel (%p247) target = $region32
      $region31: #{seq2seq_forward.3} parent=11 // pred_region
        _
      $region32: #{seq2seq_forward.3} parent=11 // pred_fallthru
        _
      // Predicated region
      $region33: #{seq2seq_forward.3} parent=11 // pred_check
        %p250 = pneg %p173
      $region34: #{seq2seq_forward.3} parent=11 // pred_check_branch
        %252 = sbr.rel (%p250) target = $region36
      $region35: #{seq2seq_forward.3} parent=11 // pred_region
        _
      $region36: #{seq2seq_forward.3} parent=11 // pred_fallthru
        _
      // Predicated region
      $region37: #{seq2seq_forward.3} parent=11 // pred_check
        %p253 = pneg %p194
      $region38: #{seq2seq_forward.3} parent=11 // pred_check_branch
        %255 = sbr.rel (%p253) target = $region40
      $region39: #{seq2seq_forward.3} parent=11 // pred_region
        _
      $region40: #{seq2seq_forward.3} parent=11 // pred_fallthru
        _
    $region12: #{seq2seq_forward.3} parent=5 // pred_fallthru
      _
    %p256 = scmp.lt.s32.totalorder %s21, 7
    // Predicated region
    $region41: #{seq2seq_forward.3} parent=5 // pred_check
      %p257 = pneg %p256
    $region42: #{seq2seq_forward.3} parent=5 // pred_check_branch
      %259 = sbr.rel (%p257) target = $region44
    $region43: #{seq2seq_forward.3} parent=5 // pred_region
      // Predicated region
      $region45: #{seq2seq_forward.3} parent=43 // pred_check
        %p260 = pneg %p41
      $region46: #{seq2seq_forward.3} parent=43 // pred_check_branch
        %262 = sbr.rel (%p260) target = $region48
      $region47: #{seq2seq_forward.3} parent=43 // pred_region
        %p263 = scmp.lt.s32.totalorder %s21, 6
        %s264 = scalar_select %p263, %s21, 6
        %s265 = smul.addr %s264, 4
        %s266 = scalar_lea.vmem %s1, %s265
      $region48: #{seq2seq_forward.3} parent=43 // pred_fallthru
        _
    $region44: #{seq2seq_forward.3} parent=5 // pred_fallthru
      _
    %p267 = scmp.le.s32.totalorder 1, %s21
    %p268 = scmp.lt.s32.totalorder %s21, 8
    %p269 = pnand %p267, %p268
    %p270 = pneg %p269
    // Predicated region
    $region49: #{seq2seq_forward.3} parent=5 // pred_check
      _
    $region50: #{seq2seq_forward.3} parent=5 // pred_check_branch
      %272 = sbr.rel (%p269) target = $region52
    $region51: #{seq2seq_forward.3} parent=5 // pred_region
      %s273 = ssub.s32 %s21, 1
      %p274 = scmp.lt.s32.totalorder %s26, 6
      %s275 = scalar_select %p274, %s26, 6
      %s276 = smul.addr %s275, 4
      %s277 = scalar_lea.vmem %s1, %s276
      %p278 = pneg %p47
      %p279 = pneg %p44
      %p280 = pneg %p68
      %p281 = pneg %p65
      %p282 = pneg %p89
      %p283 = pneg %p86
      %p284 = pneg %p110
      %p285 = pneg %p107
      %p286 = pneg %p131
      %p287 = pneg %p128
      %p288 = pneg %p152
      %p289 = pneg %p149
      %p290 = pneg %p173
      %p291 = pneg %p170
      %p292 = pneg %p194
      %p293 = pneg %p191
      %p294 = pneg %p220
      %p295 = pneg %p217
      %p296 = scmp.lt.s32.totalorder %s26, 6
      %s297 = scalar_select %p296, %s26, 6
      %s298 = smul.addr %s297, 2
      %s299 = smul.addr %s298, 8
      %s300 = scalar_lea.vmem %s9, %s299
      %p301 = scmp.lt.s32.totalorder %s26, 6
      %s302 = scalar_select %p301, %s26, 6
      %s303 = smul.addr %s302, 4
      %s304 = scalar_lea.vmem %s1, %s303
      %p305 = scmp.lt.s32.totalorder %s26, 6
      %s306 = scalar_select %p305, %s26, 6
      %s307 = smul.addr %s306, 2
      %s308 = smul.addr %s307, 8
      %s309 = scalar_lea.vmem %s9, %s308
      %p311 = scmp.eq.s32.totalorder %s26, 0
      // Predicated region
      $region53: #{seq2seq_forward.3} parent=51 // pred_check
        %p312 = pneg %p311
      $region54: #{seq2seq_forward.3} parent=51 // pred_check_branch
        %314 = sbr.rel (%p312) target = $region56
      $region55: #{seq2seq_forward.3} parent=51 // pred_region
        %v315 = vld [vmem:[%s2] sm:$0xff]
        %316 = vst [vmem:[#allocation2] sm:$0xff] %v315
        %v317 = vld [vmem:[%s3] sm:$0xff]
        %318 = vst [vmem:[#allocation3] sm:$0xff] %v317
        %319 = vst [vmem:[#allocation4] sm:$0xf] 0
      $region56: #{seq2seq_forward.3} parent=51 // pred_fallthru
        _
      %s320 = sld [smem:[#allocation6 + %s26]]
      %p321 = scmp.gt.s32.totalorder %s320, 0
      %v322 = vld [vmem:[%s304] sm:$0xf]
      %v323 = vld [vmem:[#allocation4] sm:$0xf]
      %s324 = scalar_select %p321, 1, 0
      %v325 = vstv %s324
      %vm326 = vcmp.eq.s32.totalorder %v325, 1
      %v327 = vsel %vm326, %v322, %v323
      %v328 = vld [vmem:[#allocation2] sm:$0xff]
      %v329 = vpack.c.bf16 %v328, %v328
      %v330 = vld [vmem:[%s4] sm:$0xff]
      %v331 = vld [vmem:[%s4 + $0x8] sm:$0xff]
      %v332 = vld [vmem:[%s4 + $0x10] sm:$0xff]
      %v333 = vld [vmem:[%s4 + $0x18] sm:$0xff]
      %v334 = vld [vmem:[%s4 + $0x20] sm:$0xff]
      %v335 = vld [vmem:[%s4 + $0x28] sm:$0xff]
      %v336 = vld [vmem:[%s4 + $0x30] sm:$0xff]
      %v337 = vld [vmem:[%s4 + $0x38] sm:$0xff]
      %v338 = vld [vmem:[%s4 + $0x40] sm:$0xff]
      %v339 = vld [vmem:[%s4 + $0x48] sm:$0xff]
      %v340 = vld [vmem:[%s4 + $0x50] sm:$0xff]
      %v341 = vld [vmem:[%s4 + $0x58] sm:$0xff]
      %v342 = vld [vmem:[%s4 + $0x60] sm:$0xff]
      %v343 = vld [vmem:[%s4 + $0x68] sm:$0xff]
      %v344 = vld [vmem:[%s4 + $0x70] sm:$0xff]
      %v345 = vld [vmem:[%s4 + $0x78] sm:$0xff]
      %v346 = vld [vmem:[%s4 + $0x80] sm:$0xff]
      %v347 = vld [vmem:[%s4 + $0x88] sm:$0xff]
      %v348 = vld [vmem:[%s4 + $0x90] sm:$0xff]
      %v349 = vld [vmem:[%s4 + $0x98] sm:$0xff]
      %v350 = vld [vmem:[%s4 + $0xa0] sm:$0xff]
      %v351 = vld [vmem:[%s4 + $0xa8] sm:$0xff]
      %v352 = vld [vmem:[%s4 + $0xb0] sm:$0xff]
      %v353 = vld [vmem:[%s4 + $0xb8] sm:$0xff]
      %v354 = vld [vmem:[%s4 + $0xc0] sm:$0xff]
      %v355 = vld [vmem:[%s4 + $0xc8] sm:$0xff]
      %v356 = vld [vmem:[%s4 + $0xd0] sm:$0xff]
      %v357 = vld [vmem:[%s4 + $0xd8] sm:$0xff]
      %v358 = vld [vmem:[%s4 + $0xe0] sm:$0xff]
      %v359 = vld [vmem:[%s4 + $0xe8] sm:$0xff]
      %v360 = vld [vmem:[%s4 + $0xf0] sm:$0xff]
      %v361 = vld [vmem:[%s4 + $0xf8] sm:$0xff]
      %v362 = vld [vmem:[%s4 + $0x100] sm:$0xff]
      %v363 = vld [vmem:[%s4 + $0x108] sm:$0xff]
      %v364 = vld [vmem:[%s4 + $0x110] sm:$0xff]
      %v365 = vld [vmem:[%s4 + $0x118] sm:$0xff]
      %v366 = vld [vmem:[%s4 + $0x120] sm:$0xff]
      %v367 = vld [vmem:[%s4 + $0x128] sm:$0xff]
      %v368 = vld [vmem:[%s4 + $0x130] sm:$0xff]
      %v369 = vld [vmem:[%s4 + $0x138] sm:$0xff]
      %v370 = vld [vmem:[%s4 + $0x140] sm:$0xff]
      %v371 = vld [vmem:[%s4 + $0x148] sm:$0xff]
      %v372 = vld [vmem:[%s4 + $0x150] sm:$0xff]
      %v373 = vld [vmem:[%s4 + $0x158] sm:$0xff]
      %v374 = vld [vmem:[%s4 + $0x160] sm:$0xff]
      %v375 = vld [vmem:[%s4 + $0x168] sm:$0xff]
      %v376 = vld [vmem:[%s4 + $0x170] sm:$0xff]
      %v377 = vld [vmem:[%s4 + $0x178] sm:$0xff]
      %v378 = vld [vmem:[%s4 + $0x180] sm:$0xff]
      %v379 = vld [vmem:[%s4 + $0x188] sm:$0xff]
      %v380 = vld [vmem:[%s4 + $0x190] sm:$0xff]
      %v381 = vld [vmem:[%s4 + $0x198] sm:$0xff]
      %v382 = vld [vmem:[%s4 + $0x1a0] sm:$0xff]
      %v383 = vld [vmem:[%s4 + $0x1a8] sm:$0xff]
      %v384 = vld [vmem:[%s4 + $0x1b0] sm:$0xff]
      %v385 = vld [vmem:[%s4 + $0x1b8] sm:$0xff]
      %v386 = vld [vmem:[%s4 + $0x1c0] sm:$0xff]
      %v387 = vld [vmem:[%s4 + $0x1c8] sm:$0xff]
      %v388 = vld [vmem:[%s4 + $0x1d0] sm:$0xff]
      %v389 = vld [vmem:[%s4 + $0x1d8] sm:$0xff]
      %v390 = vld [vmem:[%s4 + $0x1e0] sm:$0xff]
      %v391 = vld [vmem:[%s4 + $0x1e8] sm:$0xff]
      %v392 = vld [vmem:[%s4 + $0x1f0] sm:$0xff]
      %v393 = vld [vmem:[%s4 + $0x1f8] sm:$0xff]
      %v394 = vld [vmem:[%s5] sm:$0xf]
      %v396 = vlaneseq
      %v397 = vshrl.u32 %v396, 7
      %v398 = vsub.s32 0, %v397
      %v399 = vrot.slane %v394, %v398
      %v400 = vlaneseq
      %v401 = vshrl.u32 %v400, 7
      %v402 = vsub.s32 1, %v401
      %v403 = vrot.slane %v394, %v402
      %v404 = vlaneseq
      %v405 = vshrl.u32 %v404, 7
      %v406 = vsub.s32 2, %v405
      %v407 = vrot.slane %v394, %v406
      %v408 = vlaneseq
      %v409 = vshrl.u32 %v408, 7
      %v410 = vsub.s32 3, %v409
      %v411 = vrot.slane %v394, %v410
      %v480 = vunpack.c.l.b16 %v330
      %v481 = vunpack.c.h.b16 %v330
      %v482 = vunpack.c.l.b16 %v331
      %v483 = vunpack.c.h.b16 %v331
      %v484 = vunpack.c.l.b16 %v332
      %v485 = vunpack.c.h.b16 %v332
      %v486 = vunpack.c.l.b16 %v333
      %v487 = vunpack.c.h.b16 %v333
      %v488 = vunpack.c.l.b16 %v334
      %v489 = vunpack.c.h.b16 %v334
      %v490 = vunpack.c.l.b16 %v335
      %v491 = vunpack.c.h.b16 %v335
      %v492 = vunpack.c.l.b16 %v336
      %v493 = vunpack.c.h.b16 %v336
      %v494 = vunpack.c.l.b16 %v337
      %v495 = vunpack.c.h.b16 %v337
      %v496 = vunpack.c.l.b16 %v338
      %v497 = vunpack.c.h.b16 %v338
      %v498 = vunpack.c.l.b16 %v339
      %v499 = vunpack.c.h.b16 %v339
      %v500 = vunpack.c.l.b16 %v340
      %v501 = vunpack.c.h.b16 %v340
      %v502 = vunpack.c.l.b16 %v341
      %v503 = vunpack.c.h.b16 %v341
      %v504 = vunpack.c.l.b16 %v342
      %v505 = vunpack.c.h.b16 %v342
      %v506 = vunpack.c.l.b16 %v343
      %v507 = vunpack.c.h.b16 %v343
      %v508 = vunpack.c.l.b16 %v344
      %v509 = vunpack.c.h.b16 %v344
      %v510 = vunpack.c.l.b16 %v345
      %v511 = vunpack.c.h.b16 %v345
      %v512 = vunpack.c.l.b16 %v346
      %v513 = vunpack.c.h.b16 %v346
      %v514 = vunpack.c.l.b16 %v347
      %v515 = vunpack.c.h.b16 %v347
      %v516 = vunpack.c.l.b16 %v348
      %v517 = vunpack.c.h.b16 %v348
      %v518 = vunpack.c.l.b16 %v349
      %v519 = vunpack.c.h.b16 %v349
      %v520 = vunpack.c.l.b16 %v350
      %v521 = vunpack.c.h.b16 %v350
      %v522 = vunpack.c.l.b16 %v351
      %v523 = vunpack.c.h.b16 %v351
      %v524 = vunpack.c.l.b16 %v352
      %v525 = vunpack.c.h.b16 %v352
      %v526 = vunpack.c.l.b16 %v353
      %v527 = vunpack.c.h.b16 %v353
      %v528 = vunpack.c.l.b16 %v354
      %v529 = vunpack.c.h.b16 %v354
      %v530 = vunpack.c.l.b16 %v355
      %v531 = vunpack.c.h.b16 %v355
      %v532 = vunpack.c.l.b16 %v356
      %v533 = vunpack.c.h.b16 %v356
      %v534 = vunpack.c.l.b16 %v357
      %v535 = vunpack.c.h.b16 %v357
      %v536 = vunpack.c.l.b16 %v358
      %v537 = vunpack.c.h.b16 %v358
      %v538 = vunpack.c.l.b16 %v359
      %v539 = vunpack.c.h.b16 %v359
      %v540 = vunpack.c.l.b16 %v360
      %v541 = vunpack.c.h.b16 %v360
      %v542 = vunpack.c.l.b16 %v361
      %v543 = vunpack.c.h.b16 %v361
      %v544 = vunpack.c.l.b16 %v362
      %v545 = vunpack.c.h.b16 %v362
      %v546 = vunpack.c.l.b16 %v363
      %v547 = vunpack.c.h.b16 %v363
      %v548 = vunpack.c.l.b16 %v364
      %v549 = vunpack.c.h.b16 %v364
      %v550 = vunpack.c.l.b16 %v365
      %v551 = vunpack.c.h.b16 %v365
      %v552 = vunpack.c.l.b16 %v366
      %v553 = vunpack.c.h.b16 %v366
      %v554 = vunpack.c.l.b16 %v367
      %v555 = vunpack.c.h.b16 %v367
      %v556 = vunpack.c.l.b16 %v368
      %v557 = vunpack.c.h.b16 %v368
      %v558 = vunpack.c.l.b16 %v369
      %v559 = vunpack.c.h.b16 %v369
      %v560 = vunpack.c.l.b16 %v370
      %v561 = vunpack.c.h.b16 %v370
      %v562 = vunpack.c.l.b16 %v371
      %v563 = vunpack.c.h.b16 %v371
      %v564 = vunpack.c.l.b16 %v372
      %v565 = vunpack.c.h.b16 %v372
      %v566 = vunpack.c.l.b16 %v373
      %v567 = vunpack.c.h.b16 %v373
      %v568 = vunpack.c.l.b16 %v374
      %v569 = vunpack.c.h.b16 %v374
      %v570 = vunpack.c.l.b16 %v375
      %v571 = vunpack.c.h.b16 %v375
      %v572 = vunpack.c.l.b16 %v376
      %v573 = vunpack.c.h.b16 %v376
      %v574 = vunpack.c.l.b16 %v377
      %v575 = vunpack.c.h.b16 %v377
      %v576 = vunpack.c.l.b16 %v378
      %v577 = vunpack.c.h.b16 %v378
      %v578 = vunpack.c.l.b16 %v379
      %v579 = vunpack.c.h.b16 %v379
      %v580 = vunpack.c.l.b16 %v380
      %v581 = vunpack.c.h.b16 %v380
      %v582 = vunpack.c.l.b16 %v381
      %v583 = vunpack.c.h.b16 %v381
      %v584 = vunpack.c.l.b16 %v382
      %v585 = vunpack.c.h.b16 %v382
      %v586 = vunpack.c.l.b16 %v383
      %v587 = vunpack.c.h.b16 %v383
      %v588 = vunpack.c.l.b16 %v384
      %v589 = vunpack.c.h.b16 %v384
      %v590 = vunpack.c.l.b16 %v385
      %v591 = vunpack.c.h.b16 %v385
      %v592 = vunpack.c.l.b16 %v386
      %v593 = vunpack.c.h.b16 %v386
      %v594 = vunpack.c.l.b16 %v387
      %v595 = vunpack.c.h.b16 %v387
      %v596 = vunpack.c.l.b16 %v388
      %v597 = vunpack.c.h.b16 %v388
      %v598 = vunpack.c.l.b16 %v389
      %v599 = vunpack.c.h.b16 %v389
      %v600 = vunpack.c.l.b16 %v390
      %v601 = vunpack.c.h.b16 %v390
      %v602 = vunpack.c.l.b16 %v391
      %v603 = vunpack.c.h.b16 %v391
      %v604 = vunpack.c.l.b16 %v392
      %v605 = vunpack.c.h.b16 %v392
      %v606 = vunpack.c.l.b16 %v393
      %v607 = vunpack.c.h.b16 %v393
      %v608 = vpack.c.b16 %v484, %v480
      %v609 = vpack.c.b16 %v485, %v481
      %v610 = vpack.c.b16 %v486, %v482
      %v611 = vpack.c.b16 %v487, %v483
      %v612 = vpack.c.b16 %v492, %v488
      %v613 = vpack.c.b16 %v493, %v489
      %v614 = vpack.c.b16 %v494, %v490
      %v615 = vpack.c.b16 %v495, %v491
      %v616 = vpack.c.b16 %v500, %v496
      %v617 = vpack.c.b16 %v501, %v497
      %v618 = vpack.c.b16 %v502, %v498
      %v619 = vpack.c.b16 %v503, %v499
      %v620 = vpack.c.b16 %v508, %v504
      %v621 = vpack.c.b16 %v509, %v505
      %v622 = vpack.c.b16 %v510, %v506
      %v623 = vpack.c.b16 %v511, %v507
      %v624 = vpack.c.b16 %v516, %v512
      %v625 = vpack.c.b16 %v517, %v513
      %v626 = vpack.c.b16 %v518, %v514
      %v627 = vpack.c.b16 %v519, %v515
      %v628 = vpack.c.b16 %v524, %v520
      %v629 = vpack.c.b16 %v525, %v521
      %v630 = vpack.c.b16 %v526, %v522
      %v631 = vpack.c.b16 %v527, %v523
      %v632 = vpack.c.b16 %v532, %v528
      %v633 = vpack.c.b16 %v533, %v529
      %v634 = vpack.c.b16 %v534, %v530
      %v635 = vpack.c.b16 %v535, %v531
      %v636 = vpack.c.b16 %v540, %v536
      %v637 = vpack.c.b16 %v541, %v537
      %v638 = vpack.c.b16 %v542, %v538
      %v639 = vpack.c.b16 %v543, %v539
      %v640 = vpack.c.b16 %v548, %v544
      %v641 = vpack.c.b16 %v549, %v545
      %v642 = vpack.c.b16 %v550, %v546
      %v643 = vpack.c.b16 %v551, %v547
      %v644 = vpack.c.b16 %v556, %v552
      %v645 = vpack.c.b16 %v557, %v553
      %v646 = vpack.c.b16 %v558, %v554
      %v647 = vpack.c.b16 %v559, %v555
      %v648 = vpack.c.b16 %v564, %v560
      %v649 = vpack.c.b16 %v565, %v561
      %v650 = vpack.c.b16 %v566, %v562
      %v651 = vpack.c.b16 %v567, %v563
      %v652 = vpack.c.b16 %v572, %v568
      %v653 = vpack.c.b16 %v573, %v569
      %v654 = vpack.c.b16 %v574, %v570
      %v655 = vpack.c.b16 %v575, %v571
      %v656 = vpack.c.b16 %v580, %v576
      %v657 = vpack.c.b16 %v581, %v577
      %v658 = vpack.c.b16 %v582, %v578
      %v659 = vpack.c.b16 %v583, %v579
      %v660 = vpack.c.b16 %v588, %v584
      %v661 = vpack.c.b16 %v589, %v585
      %v662 = vpack.c.b16 %v590, %v586
      %v663 = vpack.c.b16 %v591, %v587
      %v664 = vpack.c.b16 %v596, %v592
      %v665 = vpack.c.b16 %v597, %v593
      %v666 = vpack.c.b16 %v598, %v594
      %v667 = vpack.c.b16 %v599, %v595
      %v668 = vpack.c.b16 %v604, %v600
      %v669 = vpack.c.b16 %v605, %v601
      %v670 = vpack.c.b16 %v606, %v602
      %v671 = vpack.c.b16 %v607, %v603
      %736 = vmatprep.subr.bf16.mxu0 %v609
      %737 = vmatpush1.bf16.msra.mxu0 %v608
      %738 = vmatprep.subr.bf16.mxu0 %v613
      %739 = vmatpush1.bf16.msra.mxu0 %v612
      %740 = vmatprep.subr.bf16.mxu0 %v617
      %741 = vmatpush1.bf16.msra.mxu0 %v616
      %742 = vmatprep.subr.bf16.mxu0 %v621
      %743 = vmatpush1.bf16.msra.mxu0 %v620
      %744 = vmatprep.subr.bf16.mxu0 %v625
      %745 = vmatpush1.bf16.msra.mxu0 %v624
      %746 = vmatprep.subr.bf16.mxu0 %v629
      %747 = vmatpush1.bf16.msra.mxu0 %v628
      %748 = vmatprep.subr.bf16.mxu0 %v633
      %749 = vmatpush1.bf16.msra.mxu0 %v632
      %750 = vmatprep.subr.bf16.mxu0 %v637
      %751 = vmatpush1.bf16.msra.mxu0 %v636
      %752 = vmatprep.subr.bf16.mxu0 %v641
      %753 = vmatpush1.bf16.msra.mxu0 %v640
      %754 = vmatprep.subr.bf16.mxu0 %v645
      %755 = vmatpush1.bf16.msra.mxu0 %v644
      %756 = vmatprep.subr.bf16.mxu0 %v649
      %757 = vmatpush1.bf16.msra.mxu0 %v648
      %758 = vmatprep.subr.bf16.mxu0 %v653
      %759 = vmatpush1.bf16.msra.mxu0 %v652
      %760 = vmatprep.subr.bf16.mxu0 %v657
      %761 = vmatpush1.bf16.msra.mxu0 %v656
      %762 = vmatprep.subr.bf16.mxu0 %v661
      %763 = vmatpush1.bf16.msra.mxu0 %v660
      %764 = vmatprep.subr.bf16.mxu0 %v665
      %765 = vmatpush1.bf16.msra.mxu0 %v664
      %766 = vmatprep.subr.bf16.mxu0 %v669
      %767 = vmatpush1.bf16.msra.mxu0 %v668
      %768 = vmatprep.mubr.bf16.mxu0 %v329
      %769 = vmatmul.mubr.bf16.gmra.mrb[0].mxu0 %v327
      %v770 = vpop.f32.mrb[0].mxu0
      %v771 = vadd.f32 %v399, %v770
      %v772 = vpop.f32.mrb[0].mxu0
      %v773 = vadd.f32 %v403, %v772
      %v774 = vpop.f32.mrb[0].mxu0
      %v775 = vpop.f32.mrb[0].mxu0
      %776 = vdwg.mxu0
      %777 = vmatprep.subr.bf16.mxu0 %v611
      %778 = vmatpush1.bf16.msra.mxu0 %v610
      %779 = vmatprep.subr.bf16.mxu0 %v615
      %780 = vmatpush1.bf16.msra.mxu0 %v614
      %781 = vmatprep.subr.bf16.mxu0 %v619
      %782 = vmatpush1.bf16.msra.mxu0 %v618
      %783 = vmatprep.subr.bf16.mxu0 %v623
      %784 = vmatpush1.bf16.msra.mxu0 %v622
      %785 = vmatprep.subr.bf16.mxu0 %v627
      %786 = vmatpush1.bf16.msra.mxu0 %v626
      %787 = vmatprep.subr.bf16.mxu0 %v631
      %788 = vmatpush1.bf16.msra.mxu0 %v630
      %789 = vmatprep.subr.bf16.mxu0 %v635
      %790 = vmatpush1.bf16.msra.mxu0 %v634
      %791 = vmatprep.subr.bf16.mxu0 %v639
      %792 = vmatpush1.bf16.msra.mxu0 %v638
      %793 = vmatprep.subr.bf16.mxu0 %v643
      %794 = vmatpush1.bf16.msra.mxu0 %v642
      %795 = vmatprep.subr.bf16.mxu0 %v647
      %796 = vmatpush1.bf16.msra.mxu0 %v646
      %797 = vmatprep.subr.bf16.mxu0 %v651
      %798 = vmatpush1.bf16.msra.mxu0 %v650
      %799 = vmatprep.subr.bf16.mxu0 %v655
      %800 = vmatpush1.bf16.msra.mxu0 %v654
      %801 = vmatprep.subr.bf16.mxu0 %v659
      %802 = vmatpush1.bf16.msra.mxu0 %v658
      %803 = vmatprep.subr.bf16.mxu0 %v663
      %804 = vmatpush1.bf16.msra.mxu0 %v662
      %805 = vmatprep.subr.bf16.mxu0 %v667
      %806 = vmatpush1.bf16.msra.mxu0 %v666
      %807 = vmatprep.subr.bf16.mxu0 %v671
      %808 = vmatpush1.bf16.msra.mxu0 %v670
      %809 = vmatprep.mubr.bf16.mxu0 %v329
      %810 = vmatmul.mubr.bf16.gmra.mrb[0].mxu0 %v327
      %v811 = vpop.f32.mrb[0].mxu0
      %v812 = vadd.f32 %v407, %v811
      %v813 = vpop.f32.mrb[0].mxu0
      %v814 = vadd.f32 %v411, %v813
      %v815 = vpop.f32.mrb[0].mxu0
      %v816 = vpop.f32.mrb[0].mxu0
      %817 = vdwg.mxu0
      %v818 = vxor.u32 %v771, 2147483648
      %v819 = vmul.f32 %v818, 1.442695
      %v820 = vpow.pop %v819
      %v821 = vadd.f32 %v820, 1.0
      %v822 = vrcp.pop %v821
      %v823 = vmul.f32 1.0, %v822
      %v824 = vxor.u32 %v773, 2147483648
      %v825 = vmul.f32 %v824, 1.442695
      %v826 = vpow.pop %v825
      %v827 = vadd.f32 %v826, 1.0
      %v828 = vrcp.pop %v827
      %v829 = vmul.f32 1.0, %v828
      %v830 = vtanh.pop %v812
      %v831 = vxor.u32 %v814, 2147483648
      %v832 = vmul.f32 %v831, 1.442695
      %v833 = vpow.pop %v832
      %v834 = vadd.f32 %v833, 1.0
      %v835 = vrcp.pop %v834
      %v836 = vmul.f32 1.0, %v835
      %v837 = vld [vmem:[#allocation3] sm:$0xff]
      %v838 = vmul.f32 %v829, %v837
      %v839 = vmul.f32 %v823, %v830
      %v840 = vadd.f32 %v838, %v839
      %v841 = vtanh.pop %v840
      %v842 = vmul.f32 %v836, %v841
      %843 = vst [vmem:[#allocation3] sm:$0xff] %v840
      %844 = vst [vmem:[#allocation2] sm:$0xff] %v842
      %v845 = vpack.c.bf16 %v842, %v842
      %v846 = vld [vmem:[%s6] sm:$0xff]
      %v847 = vld [vmem:[%s6 + $0x8] sm:$0xff]
      %v848 = vld [vmem:[%s6 + $0x10] sm:$0xff]
      %v849 = vld [vmem:[%s6 + $0x18] sm:$0xff]
      %v850 = vld [vmem:[%s6 + $0x20] sm:$0xff]
      %v851 = vld [vmem:[%s6 + $0x28] sm:$0xff]
      %v852 = vld [vmem:[%s6 + $0x30] sm:$0xff]
      %v853 = vld [vmem:[%s6 + $0x38] sm:$0xff]
      %v854 = vld [vmem:[%s6 + $0x40] sm:$0xff]
      %v855 = vld [vmem:[%s6 + $0x48] sm:$0xff]
      %v856 = vld [vmem:[%s6 + $0x50] sm:$0xff]
      %v857 = vld [vmem:[%s6 + $0x58] sm:$0xff]
      %v858 = vld [vmem:[%s6 + $0x60] sm:$0xff]
      %v859 = vld [vmem:[%s6 + $0x68] sm:$0xff]
      %v860 = vld [vmem:[%s6 + $0x70] sm:$0xff]
      %v861 = vld [vmem:[%s6 + $0x78] sm:$0xff]
      %v862 = vld [vmem:[%s7] sm:$0x3]
      %v864 = vlaneseq
      %v865 = vshrl.u32 %v864, 7
      %v866 = vsub.s32 0, %v865
      %v867 = vrot.slane %v862, %v866
      %v868 = vlaneseq
      %v869 = vshrl.u32 %v868, 7
      %v870 = vsub.s32 1, %v869
      %v871 = vrot.slane %v862, %v870
      %v890 = vunpack.c.l.b16 %v846
      %v891 = vunpack.c.h.b16 %v846
      %v892 = vunpack.c.l.b16 %v847
      %v893 = vunpack.c.h.b16 %v847
      %v894 = vunpack.c.l.b16 %v848
      %v895 = vunpack.c.h.b16 %v848
      %v896 = vunpack.c.l.b16 %v849
      %v897 = vunpack.c.h.b16 %v849
      %v898 = vunpack.c.l.b16 %v850
      %v899 = vunpack.c.h.b16 %v850
      %v900 = vunpack.c.l.b16 %v851
      %v901 = vunpack.c.h.b16 %v851
      %v902 = vunpack.c.l.b16 %v852
      %v903 = vunpack.c.h.b16 %v852
      %v904 = vunpack.c.l.b16 %v853
      %v905 = vunpack.c.h.b16 %v853
      %v906 = vunpack.c.l.b16 %v854
      %v907 = vunpack.c.h.b16 %v854
      %v908 = vunpack.c.l.b16 %v855
      %v909 = vunpack.c.h.b16 %v855
      %v910 = vunpack.c.l.b16 %v856
      %v911 = vunpack.c.h.b16 %v856
      %v912 = vunpack.c.l.b16 %v857
      %v913 = vunpack.c.h.b16 %v857
      %v914 = vunpack.c.l.b16 %v858
      %v915 = vunpack.c.h.b16 %v858
      %v916 = vunpack.c.l.b16 %v859
      %v917 = vunpack.c.h.b16 %v859
      %v918 = vunpack.c.l.b16 %v860
      %v919 = vunpack.c.h.b16 %v860
      %v920 = vunpack.c.l.b16 %v861
      %v921 = vunpack.c.h.b16 %v861
      %v922 = vpack.c.b16 %v892, %v890
      %v923 = vpack.c.b16 %v893, %v891
      %v924 = vpack.c.b16 %v896, %v894
      %v925 = vpack.c.b16 %v897, %v895
      %v926 = vpack.c.b16 %v900, %v898
      %v927 = vpack.c.b16 %v901, %v899
      %v928 = vpack.c.b16 %v904, %v902
      %v929 = vpack.c.b16 %v905, %v903
      %v930 = vpack.c.b16 %v908, %v906
      %v931 = vpack.c.b16 %v909, %v907
      %v932 = vpack.c.b16 %v912, %v910
      %v933 = vpack.c.b16 %v913, %v911
      %v934 = vpack.c.b16 %v916, %v914
      %v935 = vpack.c.b16 %v917, %v915
      %v936 = vpack.c.b16 %v920, %v918
      %v937 = vpack.c.b16 %v921, %v919
      %954 = vmatprep.subr.bf16.mxu0 %v923
      %955 = vmatpush1.bf16.msra.mxu0 %v922
      %956 = vmatprep.subr.bf16.mxu0 %v925
      %957 = vmatpush1.bf16.msra.mxu0 %v924
      %958 = vmatprep.subr.bf16.mxu0 %v927
      %959 = vmatpush1.bf16.msra.mxu0 %v926
      %960 = vmatprep.subr.bf16.mxu0 %v929
      %961 = vmatpush1.bf16.msra.mxu0 %v928
      %962 = vmatprep.subr.bf16.mxu0 %v931
      %963 = vmatpush1.bf16.msra.mxu0 %v930
      %964 = vmatprep.subr.bf16.mxu0 %v933
      %965 = vmatpush1.bf16.msra.mxu0 %v932
      %966 = vmatprep.subr.bf16.mxu0 %v935
      %967 = vmatpush1.bf16.msra.mxu0 %v934
      %968 = vmatprep.subr.bf16.mxu0 %v937
      %969 = vmatpush1.bf16.msra.mxu0 %v936
      %970 = vmatprep.subr.bf16.mxu0 0
      %971 = vmatpush1.bf16.msra.mxu0 0
      %972 = vmatprep.subr.bf16.mxu0 0
      %973 = vmatpush1.bf16.msra.mxu0 0
      %974 = vmatprep.subr.bf16.mxu0 0
      %975 = vmatpush1.bf16.msra.mxu0 0
      %976 = vmatprep.subr.bf16.mxu0 0
      %977 = vmatpush1.bf16.msra.mxu0 0
      %978 = vmatprep.subr.bf16.mxu0 0
      %979 = vmatpush1.bf16.msra.mxu0 0
      %980 = vmatprep.subr.bf16.mxu0 0
      %981 = vmatpush1.bf16.msra.mxu0 0
      %982 = vmatprep.subr.bf16.mxu0 0
      %983 = vmatpush1.bf16.msra.mxu0 0
      %984 = vmatprep.subr.bf16.mxu0 0
      %985 = vmatpush1.bf16.msra.mxu0 0
      %986 = vmatprep.mubr.bf16.mxu0 0
      %987 = vmatmul.mubr.bf16.gmra.mrb[0].mxu0 %v845
      %v988 = vpop.f32.mrb[0].mxu0
      %v989 = vadd.f32 %v867, %v988
      %v990 = vpop.f32.mrb[0].mxu0
      %v991 = vadd.f32 %v871, %v990
      %v992 = vpop.f32.mrb[0].mxu0
      %v993 = vpop.f32.mrb[0].mxu0
      %994 = vdwg.mxu0
      %995 = vst [vmem:[%s309] sm:$0xff] %v989
      %996 = vst [vmem:[%s309 + $0x8] sm:$0xff] %v991
      %v997 = vlaneseq
      %v998 = vand.u32 %v997, 127
      %v999 = vadd.s32 %v998, 128
      %v1000 = vmax.f32 %v989, %v991
      %1001 = vmax.xlane.f32.xlu0 %v1000
      %v1002 = vpop.xlane.xlu0 %1001
      %vm1003 = vcmp.eq.f32.partialorder %v989, %v1002
      %vm1004 = vcmp.eq.f32.partialorder %v991, %v1002
      %v1005 = vsel %vm1003, %v998, 256
      %v1006 = vsel %vm1004, %v999, 256
      %vm1007 = vcmp.lt.s32.totalorder %v1005, %v1006
      %v1008 = vsel %vm1007, %v1005, %v1006
      %v1009 = vand.u32 %v1008, 65535
      %v1010 = vshra.s32 %v1008, 16
      %v1011 = vcvt.s32.f32 %v1009
      %v1012 = vcvt.s32.f32 %v1010
      %1013 = vmin.xlane.f32.xlu0 %v1012
      %v1014 = vpop.xlane.xlu0 %1013
      %vm1015 = vcmp.eq.f32.partialorder %v1012, %v1014
      %v1016 = vsel %vm1015, %v1011, inf
      %1017 = vmin.xlane.f32.xlu0 %v1016
      %v1018 = vpop.xlane.xlu0 %1017
      %v1019 = vcvt.f32.s32 %v1018
      %v1020 = vcvt.f32.s32 %v1014
      %v1021 = vshll.u32 %v1020, 16
      %v1022 = vadd.s32 %v1021, %v1019
      %vm1023 = vcmp.eq.s32.totalorder %v998, %v1022
      %vm1024 = vcmp.eq.s32.totalorder %v999, %v1022
      %v1025 = vsel %vm1023, 1, 0
      %v1026 = vsel %vm1024, 1, 0
      %v1027 = vcvt.s32.f32 %v1025
      %v1028 = vcvt.s32.f32 %v1026
      %v1029 = vpack.c.bf16 %v1027, %v1027
      %v1030 = vpack.c.bf16 %v1028, %v1028
      %v1031 = vld [vmem:[%s8] sm:$0xf]
      %v1032 = vld [vmem:[%s8 + $0x4] sm:$0xf]
      %v1033 = vld [vmem:[%s8 + $0x8] sm:$0xf]
      %v1034 = vld [vmem:[%s8 + $0xc] sm:$0xf]
      %v1035 = vld [vmem:[%s8 + $0x10] sm:$0xf]
      %v1036 = vld [vmem:[%s8 + $0x14] sm:$0xf]
      %v1037 = vld [vmem:[%s8 + $0x18] sm:$0xf]
      %v1038 = vld [vmem:[%s8 + $0x1c] sm:$0xf]
      %v1039 = vld [vmem:[%s8 + $0x20] sm:$0xf]
      %v1040 = vld [vmem:[%s8 + $0x24] sm:$0xf]
      %v1041 = vld [vmem:[%s8 + $0x28] sm:$0xf]
      %v1042 = vld [vmem:[%s8 + $0x2c] sm:$0xf]
      %v1043 = vld [vmem:[%s8 + $0x30] sm:$0xf]
      %v1044 = vld [vmem:[%s8 + $0x34] sm:$0xf]
      %v1045 = vld [vmem:[%s8 + $0x38] sm:$0xf]
      %v1046 = vld [vmem:[%s8 + $0x3c] sm:$0xf]
      %v1047 = vld [vmem:[%s8 + $0x40] sm:$0xf]
      %v1048 = vld [vmem:[%s8 + $0x44] sm:$0xf]
      %v1049 = vld [vmem:[%s8 + $0x48] sm:$0xf]
      %v1050 = vld [vmem:[%s8 + $0x4c] sm:$0xf]
      %v1051 = vld [vmem:[%s8 + $0x50] sm:$0xf]
      %v1052 = vld [vmem:[%s8 + $0x54] sm:$0xf]
      %v1053 = vld [vmem:[%s8 + $0x58] sm:$0xf]
      %v1054 = vld [vmem:[%s8 + $0x5c] sm:$0xf]
      %v1055 = vld [vmem:[%s8 + $0x60] sm:$0xf]
      %v1056 = vld [vmem:[%s8 + $0x64] sm:$0xf]
      %v1057 = vld [vmem:[%s8 + $0x68] sm:$0xf]
      %v1058 = vld [vmem:[%s8 + $0x6c] sm:$0xf]
      %v1059 = vld [vmem:[%s8 + $0x70] sm:$0xf]
      %v1060 = vld [vmem:[%s8 + $0x74] sm:$0xf]
      %v1061 = vld [vmem:[%s8 + $0x78] sm:$0xf]
      %v1062 = vld [vmem:[%s8 + $0x7c] sm:$0xf]
      %v1095 = vunpack.c.l.b16 %v1031
      %v1096 = vunpack.c.l.b16 %v1032
      %v1097 = vunpack.c.l.b16 %v1033
      %v1098 = vunpack.c.l.b16 %v1034
      %v1099 = vunpack.c.l.b16 %v1035
      %v1100 = vunpack.c.l.b16 %v1036
      %v1101 = vunpack.c.l.b16 %v1037
      %v1102 = vunpack.c.l.b16 %v1038
      %v1103 = vunpack.c.l.b16 %v1039
      %v1104 = vunpack.c.l.b16 %v1040
      %v1105 = vunpack.c.l.b16 %v1041
      %v1106 = vunpack.c.l.b16 %v1042
      %v1107 = vunpack.c.l.b16 %v1043
      %v1108 = vunpack.c.l.b16 %v1044
      %v1109 = vunpack.c.l.b16 %v1045
      %v1110 = vunpack.c.l.b16 %v1046
      %v1111 = vunpack.c.l.b16 %v1047
      %v1112 = vunpack.c.l.b16 %v1048
      %v1113 = vunpack.c.l.b16 %v1049
      %v1114 = vunpack.c.l.b16 %v1050
      %v1115 = vunpack.c.l.b16 %v1051
      %v1116 = vunpack.c.l.b16 %v1052
      %v1117 = vunpack.c.l.b16 %v1053
      %v1118 = vunpack.c.l.b16 %v1054
      %v1119 = vunpack.c.l.b16 %v1055
      %v1120 = vunpack.c.l.b16 %v1056
      %v1121 = vunpack.c.l.b16 %v1057
      %v1122 = vunpack.c.l.b16 %v1058
      %v1123 = vunpack.c.l.b16 %v1059
      %v1124 = vunpack.c.l.b16 %v1060
      %v1125 = vunpack.c.l.b16 %v1061
      %v1126 = vunpack.c.l.b16 %v1062
      %v1127 = vpack.c.b16 %v1096, %v1095
      %v1128 = vpack.c.b16 %v1098, %v1097
      %v1129 = vpack.c.b16 %v1100, %v1099
      %v1130 = vpack.c.b16 %v1102, %v1101
      %v1131 = vpack.c.b16 %v1104, %v1103
      %v1132 = vpack.c.b16 %v1106, %v1105
      %v1133 = vpack.c.b16 %v1108, %v1107
      %v1134 = vpack.c.b16 %v1110, %v1109
      %v1135 = vpack.c.b16 %v1112, %v1111
      %v1136 = vpack.c.b16 %v1114, %v1113
      %v1137 = vpack.c.b16 %v1116, %v1115
      %v1138 = vpack.c.b16 %v1118, %v1117
      %v1139 = vpack.c.b16 %v1120, %v1119
      %v1140 = vpack.c.b16 %v1122, %v1121
      %v1141 = vpack.c.b16 %v1124, %v1123
      %v1142 = vpack.c.b16 %v1126, %v1125
      %1159 = vmatprep.subr.bf16.mxu0 0
      %1160 = vmatpush1.bf16.msra.mxu0 %v1127
      %1161 = vmatprep.subr.bf16.mxu0 0
      %1162 = vmatpush1.bf16.msra.mxu0 %v1128
      %1163 = vmatprep.subr.bf16.mxu0 0
      %1164 = vmatpush1.bf16.msra.mxu0 %v1129
      %1165 = vmatprep.subr.bf16.mxu0 0
      %1166 = vmatpush1.bf16.msra.mxu0 %v1130
      %1167 = vmatprep.subr.bf16.mxu0 0
      %1168 = vmatpush1.bf16.msra.mxu0 %v1131
      %1169 = vmatprep.subr.bf16.mxu0 0
      %1170 = vmatpush1.bf16.msra.mxu0 %v1132
      %1171 = vmatprep.subr.bf16.mxu0 0
      %1172 = vmatpush1.bf16.msra.mxu0 %v1133
      %1173 = vmatprep.subr.bf16.mxu0 0
      %1174 = vmatpush1.bf16.msra.mxu0 %v1134
      %1175 = vmatprep.subr.bf16.mxu0 0
      %1176 = vmatpush1.bf16.msra.mxu0 %v1135
      %1177 = vmatprep.subr.bf16.mxu0 0
      %1178 = vmatpush1.bf16.msra.mxu0 %v1136
      %1179 = vmatprep.subr.bf16.mxu0 0
      %1180 = vmatpush1.bf16.msra.mxu0 %v1137
      %1181 = vmatprep.subr.bf16.mxu0 0
      %1182 = vmatpush1.bf16.msra.mxu0 %v1138
      %1183 = vmatprep.subr.bf16.mxu0 0
      %1184 = vmatpush1.bf16.msra.mxu0 %v1139
      %1185 = vmatprep.subr.bf16.mxu0 0
      %1186 = vmatpush1.bf16.msra.mxu0 %v1140
      %1187 = vmatprep.subr.bf16.mxu0 0
      %1188 = vmatpush1.bf16.msra.mxu0 %v1141
      %1189 = vmatprep.subr.bf16.mxu0 0
      %1190 = vmatpush1.bf16.msra.mxu0 %v1142
      %1191 = vmatprep.mubr.bf16.mxu0 %v1030
      %1192 = vmatmul.mubr.bf16.gmra.mrb[0].mxu0 %v1029
      %v1193 = vpop.f32.mrb[0].mxu0
      %v1194 = vadd.f32 0.0, %v1193
      %v1195 = vpop.f32.mrb[0].mxu0
      %v1196 = vpop.f32.mrb[0].mxu0
      %v1197 = vpop.f32.mrb[0].mxu0
      %1198 = vdwg.mxu0
      %v1199 = vpack.c.bf16 %v1194, %v1194
      %1200 = vst [vmem:[#allocation4] sm:$0xf] %v1199
      %p1201 = scmp.lt.s32.totalorder %s26, 6
      %s1202 = scalar_select %p1201, %s26, 6
      %s1203 = smul.addr %s1202, 2
      %s1204 = smul.addr %s1203, 8
      %s1205 = scalar_lea.vmem %s9, %s1204
      // Predicated region
      $region57: #{seq2seq_forward.3} parent=51 // pred_check
        %p1206 = pneg %p217
      $region58: #{seq2seq_forward.3} parent=51 // pred_check_branch
        %1208 = sbr.rel (%p1206) target = $region60
      $region59: #{seq2seq_forward.3} parent=51 // pred_region
        _
      $region60: #{seq2seq_forward.3} parent=51 // pred_fallthru
        _
    $region52: #{seq2seq_forward.3} parent=5 // pred_fallthru
      _
    %p1209 = scmp.le.s32.totalorder 2, %s21
    // Predicated region
    $region61: #{seq2seq_forward.3} parent=5 // pred_check
      %p1210 = pneg %p1209
    $region62: #{seq2seq_forward.3} parent=5 // pred_check_branch
      %1212 = sbr.rel (%p1210) target = $region64
    $region63: #{seq2seq_forward.3} parent=5 // pred_region
      %s1213 = ssub.s32 %s21, 2
      // Predicated region
      $region65: #{seq2seq_forward.3} parent=63 // pred_check
        %p1214 = pneg %p223
      $region66: #{seq2seq_forward.3} parent=63 // pred_check_branch
        %1216 = sbr.rel (%p1214) target = $region68
      $region67: #{seq2seq_forward.3} parent=63 // pred_region
        %p1217 = scmp.lt.s32.totalorder %s27, 6
        %s1218 = scalar_select %p1217, %s27, 6
        %s1219 = smul.addr %s1218, 2
        %s1220 = smul.addr %s1219, 8
        %s1221 = scalar_lea.vmem %s9, %s1220
      $region68: #{seq2seq_forward.3} parent=63 // pred_fallthru
        _
    $region64: #{seq2seq_forward.3} parent=5 // pred_fallthru
      _
  $region6: #{seq2seq_forward.3} parent=0 // loop_footer
    %s25 = sadd.s32 1, %s21
  $region7: #{seq2seq_forward.3} parent=0 // loop_footer_branch
    %20 = sbr.rel target = $region3
  $region8: #{seq2seq_forward.3} parent=0 // loop_exit
    _

</llo_original>
